<compile_context>
chip_gen: v7x
topology: tpu7x:2x2x1
jax: 0.10.0
libtpu: 0.0.40
codegen_flags: <defaults>
</compile_context>

<pallas_src>
import jax
import jax.numpy as jnp
from jax.experimental import pallas as pl
from jax.experimental.pallas import tpu as pltpu


def _msf_linear_kernel(aux_ref, feat_ref, w_ref, noise_ref, out_ref):
    feat = feat_ref[...]                                  # (TB, Cin)   f32
    aux = aux_ref[...]                                    # (1,  Cin)   f32
    # Fused LHS: [aux * x | x**2] -> (TB, 2*Cin); cast only at the MXU inputs.
    lhs = jnp.concatenate([feat * aux, feat * feat], axis=-1)
    fused = jnp.dot(lhs.astype(jnp.bfloat16), w_ref[...],
                    preferred_element_type=jnp.float32)   # (TB, 2*Cout) f32 acc
    cout = out_ref.shape[-1]
    latent_mean = fused[:, :cout]
    latent_var = fused[:, cout:]                          # == x**2 @ variance >= 0
    out_ref[...] = latent_mean + jnp.sqrt(latent_var) * noise_ref[...]


def msf_linear_forward(features, aux, mean, log_variance, noise, *, tile_b=256):
    """features: (B, Cin); aux: (Cin,); mean/log_variance: (Cin, Cout); noise: (B, Cout)."""
    B, cin = features.shape
    cout = mean.shape[1]
    assert mean.shape == (cin, cout) and log_variance.shape == (cin, cout)
    assert noise.shape == (B, cout)

    # Hoisted parameter transform: exp() once, outside the hot path.
    variance = jnp.exp(log_variance.astype(jnp.float32))

    # Block-diagonal fused weight, cast to bf16 once.
    zeros = jnp.zeros((cin, cout), jnp.float32)
    w_fused = jnp.concatenate(
        [jnp.concatenate([mean.astype(jnp.float32), zeros], axis=1),
         jnp.concatenate([zeros, variance], axis=1)],
        axis=0).astype(jnp.bfloat16)                      # (2*Cin, 2*Cout)

    aux2d = aux.reshape(1, cin).astype(jnp.float32)

    # Batch tiling (sublane-aligned); pad B up to a tile multiple.
    tile_b = min(tile_b, pl.cdiv(B, 8) * 8)
    b_pad = pl.cdiv(B, tile_b) * tile_b
    if b_pad != B:
        pad = b_pad - B
        features = jnp.pad(features, ((0, pad), (0, 0)))
        noise = jnp.pad(noise, ((0, pad), (0, 0)))
    n_tiles = b_pad // tile_b

    out = pl.pallas_call(
        _msf_linear_kernel,
        out_shape=jax.ShapeDtypeStruct((b_pad, cout), jnp.float32),
        grid=(n_tiles,),
        in_specs=[
            pl.BlockSpec((1, cin), lambda i: (0, 0)),            # aux (resident)
            pl.BlockSpec((tile_b, cin), lambda i: (i, 0)),       # features (streamed)
            pl.BlockSpec((2 * cin, 2 * cout), lambda i: (0, 0)), # fused weight (resident)
            pl.BlockSpec((tile_b, cout), lambda i: (i, 0)),      # noise (streamed)
        ],
        out_specs=pl.BlockSpec((tile_b, cout), lambda i: (i, 0)),
        compiler_params=pltpu.CompilerParams(
            dimension_semantics=("parallel",)),                  # megacore on v7x
    )(aux2d, features.astype(jnp.float32), w_fused, noise.astype(jnp.float32))

    return out[:B]


def _reference_f32(features, aux, mean, log_variance, noise):
    latent_mean = (aux[None, :] * features) @ mean
    latent_var = (features ** 2) @ jnp.exp(log_variance)
    return latent_mean + jnp.sqrt(latent_var) * noise


def _reference_bf16_mxu(features, aux, mean, variance, noise):
    # Same math the kernel performs: f32 elementwise, bf16 dot inputs, f32 acc.
    lhs_m = (aux[None, :] * features).astype(jnp.bfloat16)
    lhs_v = (features ** 2).astype(jnp.bfloat16)
    lm = jnp.dot(lhs_m, mean.astype(jnp.bfloat16), preferred_element_type=jnp.float32)
    lv = jnp.dot(lhs_v, variance.astype(jnp.bfloat16), preferred_element_type=jnp.float32)
    return lm + jnp.sqrt(lv) * noise


if __name__ == "__main__":
    key = jax.random.PRNGKey(0)
    k_feat, k_mean, k_logvar, k_aux, k_noise = jax.random.split(key, 5)

    # Lane-dense small problem: Cin, Cout multiples of 128; B not a tile multiple
    # (exercises the batch-padding path).
    B, Cin, Cout = 500, 128, 256

    features = jax.random.normal(k_feat, (B, Cin), dtype=jnp.float32)

    # Parameters matching MSFLinear.__init__:
    #   mean: xavier_normal_ over (Cin, Cout)
    xavier_std = jnp.sqrt(2.0 / (Cin + Cout))
    mean = xavier_std * jax.random.normal(k_mean, (Cin, Cout), dtype=jnp.float32)
    #   log_variance ~ Normal(exp(-9), 0.001)
    log_variance = (jnp.exp(-9.0)
                    + 0.001 * jax.random.normal(k_logvar, (Cin, Cout), dtype=jnp.float32))

    # Forward-pass random draws (base_dist = Normal(1,1), noise_dist = Normal(0,1)).
    aux = 1.0 + jax.random.normal(k_aux, (Cin,), dtype=jnp.float32)
    noise = jax.random.normal(k_noise, (B, Cout), dtype=jnp.float32)

    out = msf_linear_forward(features, aux, mean, log_variance, noise, tile_b=256)
    out = jax.block_until_ready(out)
    assert out.shape == (B, Cout)

    # Tight check vs a reference that models the kernel's bf16-MXU arithmetic.
    ref_bf16 = _reference_bf16_mxu(features, aux, mean, jnp.exp(log_variance), noise)
    assert jnp.allclose(out, ref_bf16, atol=2e-3, rtol=2e-3), "mismatch vs bf16-MXU reference"

    # Looser check vs the pure-f32 module semantics (bf16 weight/operand quantization).
    ref_f32 = _reference_f32(features, aux, mean, log_variance, noise)
    assert jnp.allclose(out, ref_f32, atol=1e-1, rtol=1e-1), "mismatch vs f32 reference"

    print("KERNEL_OK")
</pallas_src>

<mosaic_0001>
module attributes {stable_mosaic.version = 11 : i64} {
  func.func @_msf_linear_kernel(%arg0: i32, %arg1: memref<1x128xf32, #tpu.memory_space<vmem>>, %arg2: memref<256x128xf32, #tpu.memory_space<vmem>>, %arg3: memref<256x512xbf16, #tpu.memory_space<vmem>>, %arg4: memref<256x256xf32, #tpu.memory_space<vmem>>, %arg5: memref<256x256xf32, #tpu.memory_space<vmem>>) attributes {dimension_semantics = [#tpu.dimension_semantics<parallel>], iteration_bounds = array<i64: 2>, scalar_prefetch = 0 : i64, scratch_operands = 0 : i64, tpu.core_type = #tpu.core_type<tc>, window_params = [{pipeline_mode = #tpu.pipeline_mode<synchronous>, transform_indices = @transform_0, window_bounds = array<i64: 1, 128>}, {transform_indices = @transform_1, window_bounds = array<i64: 256, 128>}, {pipeline_mode = #tpu.pipeline_mode<synchronous>, transform_indices = @transform_2, window_bounds = array<i64: 256, 512>}, {transform_indices = @transform_3, window_bounds = array<i64: 256, 256>}, {transform_indices = @transform_4, window_bounds = array<i64: 256, 256>}]} {
    %c0 = arith.constant 0 : index
    %c0_0 = arith.constant 0 : index
    %0 = vector.load %arg2[%c0, %c0_0] : memref<256x128xf32, #tpu.memory_space<vmem>>, vector<256x128xf32>
    %c0_1 = arith.constant 0 : index
    %c0_2 = arith.constant 0 : index
    %1 = vector.load %arg1[%c0_1, %c0_2] : memref<1x128xf32, #tpu.memory_space<vmem>>, vector<1x128xf32>
    %2 = vector.broadcast %1 : vector<1x128xf32> to vector<256x128xf32>
    %3 = arith.mulf %0, %2 : vector<256x128xf32>
    %4 = arith.mulf %0, %0 : vector<256x128xf32>
    %5 = tpu.concatenate %3, %4 in 1 : vector<256x128xf32>, vector<256x128xf32> -> vector<256x256xf32>
    %6 = arith.truncf %5 : vector<256x256xf32> to vector<256x256xbf16>
    %c0_3 = arith.constant 0 : index
    %c0_4 = arith.constant 0 : index
    %7 = vector.load %arg3[%c0_3, %c0_4] : memref<256x512xbf16, #tpu.memory_space<vmem>>, vector<256x512xbf16>
    %cst = arith.constant dense<0.000000e+00> : vector<256x512xf32>
    %8 = tpu.matmul %6, %7, %cst {dimension_numbers = #tpu.dot_dimension_numbers<[1], [0], [0], [1], [0, 0, 1, 1], [], []>} : vector<256x256xbf16>, vector<256x512xbf16>, vector<256x512xf32> -> vector<256x512xf32>
    %9 = vector.extract_strided_slice %8 {offsets = [0, 0], sizes = [256, 256], strides = [1, 1]} : vector<256x512xf32> to vector<256x256xf32>
    %10 = vector.extract_strided_slice %8 {offsets = [0, 256], sizes = [256, 256], strides = [1, 1]} : vector<256x512xf32> to vector<256x256xf32>
    %11 = math.sqrt %10 : vector<256x256xf32>
    %c0_5 = arith.constant 0 : index
    %c0_6 = arith.constant 0 : index
    %12 = vector.load %arg4[%c0_5, %c0_6] : memref<256x256xf32, #tpu.memory_space<vmem>>, vector<256x256xf32>
    %13 = arith.mulf %11, %12 : vector<256x256xf32>
    %14 = arith.addf %9, %13 : vector<256x256xf32>
    %c0_7 = arith.constant 0 : index
    %c0_8 = arith.constant 0 : index
    %15 = vector.load %arg5[%c0_7, %c0_8] : memref<256x256xf32, #tpu.memory_space<vmem>>, vector<256x256xf32>
    tpu.vector_store %arg5[%c0_7, %c0_8], %14 {strides = array<i32>} : memref<256x256xf32, #tpu.memory_space<vmem>>, vector<256x256xf32>,
    return
  }
  func.func @transform_0(%arg0: i32) -> (i32, i32) {
    %c0_i32 = arith.constant 0 : i32
    %c0_i32_0 = arith.constant 0 : i32
    %c0_i32_1 = arith.constant 0 : i32
    return %c0_i32, %c0_i32_0 : i32, i32
  }
  func.func @transform_1(%arg0: i32) -> (i32, i32) {
    %c0_i32 = arith.constant 0 : i32
    %c0_i32_0 = arith.constant 0 : i32
    return %arg0, %c0_i32 : i32, i32
  }
  func.func @transform_2(%arg0: i32) -> (i32, i32) {
    %c0_i32 = arith.constant 0 : i32
    %c0_i32_0 = arith.constant 0 : i32
    %c0_i32_1 = arith.constant 0 : i32
    return %c0_i32, %c0_i32_0 : i32, i32
  }
  func.func @transform_3(%arg0: i32) -> (i32, i32) {
    %c0_i32 = arith.constant 0 : i32
    %c0_i32_0 = arith.constant 0 : i32
    return %arg0, %c0_i32 : i32, i32
  }
  func.func @transform_4(%arg0: i32) -> (i32, i32) {
    %c0_i32 = arith.constant 0 : i32
    %c0_i32_0 = arith.constant 0 : i32
    return %arg0, %c0_i32 : i32, i32
  }
}

</mosaic_0001>

<llo_original>
// kernel: tpu_custom_call.1
$region0: #{tpu_custom_call.1}
  #allocation0 [shape = 'u32[]', space=smem, size = 0x4, offset = 0x4, fixed_abs, tag = 'smem constant byte address 0x4 - core index']
  #allocation1 [shape = 'u32[144,128]{1,0:T(1,128)}', space=vmem, size = 0x12000, scoped, tag = 'internal scratch']
  %s0 = inlined_call_operand.hbm [shape: f32[1,128], index: 0, kind: input, shape index: {}]
  %s1 = inlined_call_operand.hbm [shape: f32[512,128], index: 1, kind: input, shape index: {}]
  %s2 = inlined_call_operand.hbm [shape: bf16[256,512], index: 2, kind: input, shape index: {}]
  %s3 = inlined_call_operand.hbm [shape: f32[512,256], index: 3, kind: input, shape index: {}]
  %s4 = inlined_call_operand.hbm [shape: f32[512,256], index: 4, kind: output, shape index: {}]
  %s5 = sld [smem:[#allocation0]]
  $region65: #{tpu_custom_call.1} parent=0
    _
  %s7 = ssub.s32 1, %s5
  %s8 = scalar_select 0, %s7, %s5
  $region1: #{tpu_custom_call.1} parent=0
    #allocation2 [shape = 'u8[512]{0}', space=vmem, size = 0x400, scoped, tag = 'input window, operand 0, single buffered']
    #allocation3 [shape = 's32[2]{0}', space=sflag, size = 0x8, scoped, tag = 'scoped memory for tpu_custom_call.1']
    #allocation4 [shape = 's32[2]{0}', space=sflag, size = 0x8, scoped, tag = 'scoped memory for tpu_custom_call.1']
    #allocation5 [shape = 'u8[262144]{0}', space=vmem, size = 0x40000, scoped, tag = 'input window, operand 1']
    #allocation6 [shape = 's32[2]{0}', space=sflag, size = 0x8, scoped, tag = 'scoped memory for tpu_custom_call.1']
    #allocation7 [shape = 'u8[262144]{0}', space=vmem, size = 0x40000, scoped, tag = 'input window, operand 2, single buffered']
    #allocation8 [shape = 'u8[524288]{0}', space=vmem, size = 0x80000, scoped, tag = 'input window, operand 3']
    #allocation9 [shape = 's32[2]{0}', space=sflag, size = 0x8, scoped, tag = 'scoped memory for tpu_custom_call.1']
    #allocation10 [shape = 'u8[524288]{0}', space=vmem, size = 0x80000, scoped, tag = 'output window, operand 0']
    %9 = vsyncpa [#allocation3], 0
    %10 = vsyncpa [#allocation6], 0
    %s11 = scalar_lea.sflag [#allocation6], 1
    %12 = vsyncpa %s11, 0
    %13 = vsyncpa [#allocation9], 0
    %s14 = scalar_lea.sflag [#allocation9], 1
    %15 = vsyncpa %s14, 0
    %16 = vsyncpa [#allocation4], 0
    %s17 = scalar_lea.sflag [#allocation4], 1
    %18 = vsyncpa %s17, 0
    loop: start=0, step=1, limit=4
    $region2: #{tpu_custom_call.1} parent=1 // loop_pre_header
      _
    $region3: #{tpu_custom_call.1} parent=1 // loop_header
      %s20 = sphi 0, %s24
      %p21 = scmp.ge.s32.totalorder %s20, 4
      %s28 = sphi 0, %s28
      %s30 = sphi 0, %s28
      %s31 = sphi 0, %s30
      %s45 = sphi 0, %s31
      %s51 = sphi 0, %s53
      %s54 = sphi 0, %s51
      %s55 = sphi 0, %s54
      %s71 = sphi 0, %s55
      %s75 = sphi 0, %s75
      %s77 = sphi 0, %s75
      %s78 = sphi 0, %s77
      %s92 = sphi 0, %s78
      %s98 = sphi 0, %s100
      %s101 = sphi 0, %s98
      %s102 = sphi 0, %s101
      %s118 = sphi 0, %s102
      %s124 = sphi 0, %s126
      %s127 = sphi 0, %s124
      %s128 = sphi 0, %s127
      %s144 = sphi 0, %s128
    $region4: #{tpu_custom_call.1} parent=1 // loop_header_branch
      %23 = sbr.rel (%p21) target = $region8
    $region5: #{tpu_custom_call.1} parent=1 // loop_body
      %s25 = ssub.s32 %s20, 1
      %s26 = ssub.s32 %s20, 2
      %s27 = sadd.s32 %s20, 1
      %s29 = sadd.s32 %s28, 1
      %p32 = scmp.eq.s32.totalorder %s20, 1
      %p33 = scmp.ne.s32.totalorder %s28, %s30
      %p34 = scmp.eq.s32.totalorder %s20, 0
      %p35 = por %p33, %p34
      %p36 = scmp.ne.s32.totalorder %s28, %s30
      %p37 = scmp.eq.s32.totalorder %s25, 1
      %p38 = por %p36, %p37
      %p39 = scmp.ne.s32.totalorder %s30, %s31
      %p40 = scmp.eq.s32.totalorder %s25, 0
      %p41 = por %p39, %p40
      %p42 = scmp.ne.s32.totalorder %s30, %s31
      %p43 = scmp.eq.s32.totalorder %s26, 1
      %p44 = por %p42, %p43
      %p46 = scmp.ne.s32.totalorder %s31, %s45
      %p47 = scmp.eq.s32.totalorder %s26, 0
      %p48 = por %p46, %p47
      %s49 = ssub.s32 %s20, %s27
      %p50 = scmp.eq.s32.totalorder %s49, 0
      %s52 = sadd.s32 %s51, 1
      %s53 = scalar_select %p50, %s51, %s52
      %p56 = pneg %p50
      %p57 = scmp.eq.s32.totalorder %s20, 1
      %p58 = por %p56, %p57
      %p59 = scmp.ne.s32.totalorder %s51, %s54
      %p60 = scmp.eq.s32.totalorder %s20, 0
      %p61 = por %p59, %p60
      %p62 = scmp.ne.s32.totalorder %s51, %s54
      %p63 = scmp.eq.s32.totalorder %s25, 1
      %p64 = por %p62, %p63
      %p65 = scmp.ne.s32.totalorder %s54, %s55
      %p66 = scmp.eq.s32.totalorder %s25, 0
      %p67 = por %p65, %p66
      %p68 = scmp.ne.s32.totalorder %s54, %s55
      %p69 = scmp.eq.s32.totalorder %s26, 1
      %p70 = por %p68, %p69
      %p72 = scmp.ne.s32.totalorder %s55, %s71
      %p73 = scmp.eq.s32.totalorder %s26, 0
      %p74 = por %p72, %p73
      %s76 = sadd.s32 %s75, 1
      %p79 = scmp.eq.s32.totalorder %s20, 1
      %p80 = scmp.ne.s32.totalorder %s75, %s77
      %p81 = scmp.eq.s32.totalorder %s20, 0
      %p82 = por %p80, %p81
      %p83 = scmp.ne.s32.totalorder %s75, %s77
      %p84 = scmp.eq.s32.totalorder %s25, 1
      %p85 = por %p83, %p84
      %p86 = scmp.ne.s32.totalorder %s77, %s78
      %p87 = scmp.eq.s32.totalorder %s25, 0
      %p88 = por %p86, %p87
      %p89 = scmp.ne.s32.totalorder %s77, %s78
      %p90 = scmp.eq.s32.totalorder %s26, 1
      %p91 = por %p89, %p90
      %p93 = scmp.ne.s32.totalorder %s78, %s92
      %p94 = scmp.eq.s32.totalorder %s26, 0
      %p95 = por %p93, %p94
      %s96 = ssub.s32 %s20, %s27
      %p97 = scmp.eq.s32.totalorder %s96, 0
      %s99 = sadd.s32 %s98, 1
      %s100 = scalar_select %p97, %s98, %s99
      %p103 = pneg %p97
      %p104 = scmp.eq.s32.totalorder %s20, 1
      %p105 = por %p103, %p104
      %p106 = scmp.ne.s32.totalorder %s98, %s101
      %p107 = scmp.eq.s32.totalorder %s20, 0
      %p108 = por %p106, %p107
      %p109 = scmp.ne.s32.totalorder %s98, %s101
      %p110 = scmp.eq.s32.totalorder %s25, 1
      %p111 = por %p109, %p110
      %p112 = scmp.ne.s32.totalorder %s101, %s102
      %p113 = scmp.eq.s32.totalorder %s25, 0
      %p114 = por %p112, %p113
      %p115 = scmp.ne.s32.totalorder %s101, %s102
      %p116 = scmp.eq.s32.totalorder %s26, 1
      %p117 = por %p115, %p116
      %p119 = scmp.ne.s32.totalorder %s102, %s118
      %p120 = scmp.eq.s32.totalorder %s26, 0
      %p121 = por %p119, %p120
      %s122 = ssub.s32 %s20, %s27
      %p123 = scmp.eq.s32.totalorder %s122, 0
      %s125 = sadd.s32 %s124, 1
      %s126 = scalar_select %p123, %s124, %s125
      %p129 = pneg %p123
      %p130 = scmp.eq.s32.totalorder %s20, 1
      %p131 = por %p129, %p130
      %p132 = scmp.ne.s32.totalorder %s124, %s127
      %p133 = scmp.eq.s32.totalorder %s20, 0
      %p134 = por %p132, %p133
      %p135 = scmp.ne.s32.totalorder %s124, %s127
      %p136 = scmp.eq.s32.totalorder %s25, 1
      %p137 = por %p135, %p136
      %p138 = scmp.ne.s32.totalorder %s127, %s128
      %p139 = scmp.eq.s32.totalorder %s25, 0
      %p140 = por %p138, %p139
      %p141 = scmp.ne.s32.totalorder %s127, %s128
      %p142 = scmp.eq.s32.totalorder %s26, 1
      %p143 = por %p141, %p142
      %p145 = scmp.ne.s32.totalorder %s128, %s144
      %p146 = scmp.eq.s32.totalorder %s26, 0
      %p147 = por %p145, %p146
      %p148 = scmp.le.s32.totalorder 1, %s20
      %p149 = scmp.lt.s32.totalorder %s20, 3
      %p150 = pnand %p148, %p149
      %p151 = pneg %p150
      // Predicated region
      $region9: #{tpu_custom_call.1} parent=5 // pred_check
        _
      $region10: #{tpu_custom_call.1} parent=5 // pred_check_branch
        %153 = sbr.rel (%p150) target = $region12
      $region11: #{tpu_custom_call.1} parent=5 // pred_region
        %s154 = ssub.s32 %s20, 1
        // Predicated region
        $region13: #{tpu_custom_call.1} parent=11 // pred_check
          %p155 = pneg %p41
        $region14: #{tpu_custom_call.1} parent=11 // pred_check_branch
          %157 = sbr.rel (%p155) target = $region16
        $region15: #{tpu_custom_call.1} parent=11 // pred_region
          %s159 = ssub.s32 16, 16
          %160 = vsyncadd [#allocation3], %s159
          %s162 = sshll.u32 [#allocation2], 4
          %s163 = int_to_ptr.vmem [resolvable:$true] %s162
          %165 = dma.hbm_to_vmem [thread:$0]  %s0, 16, %s163, [#allocation3]
        $region16: #{tpu_custom_call.1} parent=11 // pred_fallthru
          _
        // Predicated region
        $region17: #{tpu_custom_call.1} parent=11 // pred_check
          %p166 = pneg %p88
        $region18: #{tpu_custom_call.1} parent=11 // pred_check_branch
          %168 = sbr.rel (%p166) target = $region20
        $region19: #{tpu_custom_call.1} parent=11 // pred_region
          %s170 = ssub.s32 8192, 8192
          %171 = vsyncadd [#allocation6], %s170
          %s172 = sshll.u32 [#allocation7], 4
          %s173 = int_to_ptr.vmem [resolvable:$true] %s172
          %178 = dma.hbm_to_vmem [thread:$0]  %s2, 8192, %s173, [#allocation6], 256, 256, 16
        $region20: #{tpu_custom_call.1} parent=11 // pred_fallthru
          _
      $region12: #{tpu_custom_call.1} parent=5 // pred_fallthru
        _
      %p179 = scmp.lt.s32.totalorder %s20, 2
      // Predicated region
      $region21: #{tpu_custom_call.1} parent=5 // pred_check
        %p180 = pneg %p179
      $region22: #{tpu_custom_call.1} parent=5 // pred_check_branch
        %182 = sbr.rel (%p180) target = $region24
      $region23: #{tpu_custom_call.1} parent=5 // pred_region
        // Predicated region
        $region25: #{tpu_custom_call.1} parent=23 // pred_check
          %p183 = pneg %p61
        $region26: #{tpu_custom_call.1} parent=23 // pred_check_branch
          %185 = sbr.rel (%p183) target = $region28
        $region27: #{tpu_custom_call.1} parent=23 // pred_region
          %s186 = sand.u32 %s20, 1
          %s187 = scalar_lea.sflag [#allocation6], %s186
          %s188 = sand.u32 %s51, 1
          %s189 = smul.addr %s188, 256
          %s190 = scalar_lea.vmem [#allocation5], %s189
          %s191 = smul.u32 32, %s20
          %s193 = ssub.s32 4096, 4096
          %194 = vsyncadd %s187, %s193
          %s195 = smul.addr %s191, 128
          %s196 = scalar_lea.hbm %s1, %s195
          %s197 = sshll.u32 %s190, 4
          %s198 = int_to_ptr.vmem [resolvable:$true] %s197
          %203 = dma.hbm_to_vmem [thread:$0]  %s196, 4096, %s198, %s187, 128, 128, 8
        $region28: #{tpu_custom_call.1} parent=23 // pred_fallthru
          _
        // Predicated region
        $region29: #{tpu_custom_call.1} parent=23 // pred_check
          %p204 = pneg %p108
        $region30: #{tpu_custom_call.1} parent=23 // pred_check_branch
          %206 = sbr.rel (%p204) target = $region32
        $region31: #{tpu_custom_call.1} parent=23 // pred_region
          %s207 = sand.u32 %s98, 1
          %s208 = scalar_lea.sflag [#allocation9], %s207
          %s209 = sand.u32 %s98, 1
          %s210 = smul.addr %s209, 512
          %s211 = scalar_lea.vmem [#allocation8], %s210
          %s212 = smul.u32 32, %s20
          %s214 = ssub.s32 8192, 8192
          %215 = vsyncadd %s208, %s214
          %s216 = smul.addr %s212, 2
          %s217 = smul.addr %s216, 128
          %s218 = scalar_lea.hbm %s3, %s217
          %s219 = sshll.u32 %s211, 4
          %s220 = int_to_ptr.vmem [resolvable:$true] %s219
          %225 = dma.hbm_to_vmem [thread:$0]  %s218, 8192, %s220, %s208, 256, 256, 16
        $region32: #{tpu_custom_call.1} parent=23 // pred_fallthru
          _
      $region24: #{tpu_custom_call.1} parent=5 // pred_fallthru
        _
      %p226 = scmp.le.s32.totalorder 1, %s20
      %p227 = scmp.lt.s32.totalorder %s20, 3
      %p228 = pnand %p226, %p227
      %p229 = pneg %p228
      // Predicated region
      $region33: #{tpu_custom_call.1} parent=5 // pred_check
        _
      $region34: #{tpu_custom_call.1} parent=5 // pred_check_branch
        %231 = sbr.rel (%p228) target = $region36
      $region35: #{tpu_custom_call.1} parent=5 // pred_region
        %s232 = ssub.s32 %s20, 1
        // Predicated region
        $region37: #{tpu_custom_call.1} parent=35 // pred_check
          %p233 = pneg %p41
        $region38: #{tpu_custom_call.1} parent=35 // pred_check_branch
          %235 = sbr.rel (%p233) target = $region40
        $region39: #{tpu_custom_call.1} parent=35 // pred_region
          %236 = dma.done [#allocation3], 16
        $region40: #{tpu_custom_call.1} parent=35 // pred_fallthru
          _
        %s237 = sand.u32 %s25, 1
        %s238 = scalar_lea.sflag [#allocation6], %s237
        %s239 = sand.u32 %s54, 1
        %s240 = smul.addr %s239, 256
        %s241 = scalar_lea.vmem [#allocation5], %s240
        // Predicated region
        $region41: #{tpu_custom_call.1} parent=35 // pred_check
          %p242 = pneg %p67
        $region42: #{tpu_custom_call.1} parent=35 // pred_check_branch
          %244 = sbr.rel (%p242) target = $region44
        $region43: #{tpu_custom_call.1} parent=35 // pred_region
          %245 = dma.done %s238, 4096
        $region44: #{tpu_custom_call.1} parent=35 // pred_fallthru
          _
        // Predicated region
        $region45: #{tpu_custom_call.1} parent=35 // pred_check
          %p246 = pneg %p88
        $region46: #{tpu_custom_call.1} parent=35 // pred_check_branch
          %248 = sbr.rel (%p246) target = $region48
        $region47: #{tpu_custom_call.1} parent=35 // pred_region
          %249 = dma.done [#allocation6], 8192
        $region48: #{tpu_custom_call.1} parent=35 // pred_fallthru
          _
        %s250 = sand.u32 %s101, 1
        %s251 = scalar_lea.sflag [#allocation9], %s250
        %s252 = sand.u32 %s101, 1
        %s253 = smul.addr %s252, 512
        %s254 = scalar_lea.vmem [#allocation8], %s253
        // Predicated region
        $region49: #{tpu_custom_call.1} parent=35 // pred_check
          %p255 = pneg %p114
        $region50: #{tpu_custom_call.1} parent=35 // pred_check_branch
          %257 = sbr.rel (%p255) target = $region52
        $region51: #{tpu_custom_call.1} parent=35 // pred_region
          %258 = dma.done %s251, 8192
        $region52: #{tpu_custom_call.1} parent=35 // pred_fallthru
          _
        %p259 = pneg %p41
        %p260 = pneg %p38
        %s261 = sand.u32 %s25, 1
        %s262 = scalar_lea.sflag [#allocation6], %s261
        %s263 = sand.u32 %s54, 1
        %s264 = smul.addr %s263, 256
        %s265 = scalar_lea.vmem [#allocation5], %s264
        %p266 = pneg %p67
        %p267 = pneg %p64
        %p268 = pneg %p88
        %p269 = pneg %p85
        %s270 = sand.u32 %s101, 1
        %s271 = scalar_lea.sflag [#allocation9], %s270
        %s272 = sand.u32 %s101, 1
        %s273 = smul.addr %s272, 512
        %s274 = scalar_lea.vmem [#allocation8], %s273
        %p275 = pneg %p114
        %p276 = pneg %p111
        %p277 = pneg %p140
        %p278 = pneg %p137
        %s279 = sand.u32 %s127, 1
        %s280 = scalar_lea.sflag [#allocation4], %s279
        %s281 = sand.u32 %s127, 1
        %s282 = smul.addr %s281, 512
        %s283 = scalar_lea.vmem [#allocation10], %s282
        %s284 = smul.u32 32, %s25
        %s285 = smul.u32 32, %s25
        %s286 = smul.u32 32, %s25
        %v287 = vld [vmem:[%s241] sm:$0xff]
        %v288 = vld [vmem:[%s241 + $0x8] sm:$0xff]
        %v289 = vld [vmem:[%s241 + $0x10] sm:$0xff]
        %v290 = vld [vmem:[%s241 + $0x18] sm:$0xff]
        %v291 = vld [vmem:[%s241 + $0x20] sm:$0xff]
        %v292 = vld [vmem:[%s241 + $0x28] sm:$0xff]
        %v293 = vld [vmem:[%s241 + $0x30] sm:$0xff]
        %v294 = vld [vmem:[%s241 + $0x38] sm:$0xff]
        %v295 = vld [vmem:[%s241 + $0x40] sm:$0xff]
        %v296 = vld [vmem:[%s241 + $0x48] sm:$0xff]
        %v297 = vld [vmem:[%s241 + $0x50] sm:$0xff]
        %v298 = vld [vmem:[%s241 + $0x58] sm:$0xff]
        %v299 = vld [vmem:[%s241 + $0x60] sm:$0xff]
        %v300 = vld [vmem:[%s241 + $0x68] sm:$0xff]
        %v301 = vld [vmem:[%s241 + $0x70] sm:$0xff]
        %v302 = vld [vmem:[%s241 + $0x78] sm:$0xff]
        %v303 = vld [vmem:[%s241 + $0x80] sm:$0xff]
        %v304 = vld [vmem:[%s241 + $0x88] sm:$0xff]
        %v305 = vld [vmem:[%s241 + $0x90] sm:$0xff]
        %v306 = vld [vmem:[%s241 + $0x98] sm:$0xff]
        %v307 = vld [vmem:[%s241 + $0xa0] sm:$0xff]
        %v308 = vld [vmem:[%s241 + $0xa8] sm:$0xff]
        %v309 = vld [vmem:[%s241 + $0xb0] sm:$0xff]
        %v310 = vld [vmem:[%s241 + $0xb8] sm:$0xff]
        %v311 = vld [vmem:[%s241 + $0xc0] sm:$0xff]
        %v312 = vld [vmem:[%s241 + $0xc8] sm:$0xff]
        %v313 = vld [vmem:[%s241 + $0xd0] sm:$0xff]
        %v314 = vld [vmem:[%s241 + $0xd8] sm:$0xff]
        %v315 = vld [vmem:[%s241 + $0xe0] sm:$0xff]
        %v316 = vld [vmem:[%s241 + $0xe8] sm:$0xff]
        %v317 = vld [vmem:[%s241 + $0xf0] sm:$0xff]
        %v318 = vld [vmem:[%s241 + $0xf8] sm:$0xff]
        %v319 = vld [vmem:[#allocation2] sm:$0x1]
        %v321 = vlaneseq
        %v322 = vshrl.u32 %v321, 7
        %v323 = vsub.s32 0, %v322
        %v324 = vrot.slane %v319, %v323
        %v326 = vmul.f32 %v287, %v324
        %v327 = vmul.f32 %v288, %v324
        %v328 = vmul.f32 %v289, %v324
        %v329 = vmul.f32 %v290, %v324
        %v330 = vmul.f32 %v291, %v324
        %v331 = vmul.f32 %v292, %v324
        %v332 = vmul.f32 %v293, %v324
        %v333 = vmul.f32 %v294, %v324
        %v334 = vmul.f32 %v295, %v324
        %v335 = vmul.f32 %v296, %v324
        %v336 = vmul.f32 %v297, %v324
        %v337 = vmul.f32 %v298, %v324
        %v338 = vmul.f32 %v299, %v324
        %v339 = vmul.f32 %v300, %v324
        %v340 = vmul.f32 %v301, %v324
        %v341 = vmul.f32 %v302, %v324
        %v342 = vmul.f32 %v303, %v324
        %v343 = vmul.f32 %v304, %v324
        %v344 = vmul.f32 %v305, %v324
        %v345 = vmul.f32 %v306, %v324
        %v346 = vmul.f32 %v307, %v324
        %v347 = vmul.f32 %v308, %v324
        %v348 = vmul.f32 %v309, %v324
        %v349 = vmul.f32 %v310, %v324
        %v350 = vmul.f32 %v311, %v324
        %v351 = vmul.f32 %v312, %v324
        %v352 = vmul.f32 %v313, %v324
        %v353 = vmul.f32 %v314, %v324
        %v354 = vmul.f32 %v315, %v324
        %v355 = vmul.f32 %v316, %v324
        %v356 = vmul.f32 %v317, %v324
        %v357 = vmul.f32 %v318, %v324
        %v358 = vmul.f32 %v287, %v287
        %v359 = vmul.f32 %v288, %v288
        %v360 = vmul.f32 %v289, %v289
        %v361 = vmul.f32 %v290, %v290
        %v362 = vmul.f32 %v291, %v291
        %v363 = vmul.f32 %v292, %v292
        %v364 = vmul.f32 %v293, %v293
        %v365 = vmul.f32 %v294, %v294
        %v366 = vmul.f32 %v295, %v295
        %v367 = vmul.f32 %v296, %v296
        %v368 = vmul.f32 %v297, %v297
        %v369 = vmul.f32 %v298, %v298
        %v370 = vmul.f32 %v299, %v299
        %v371 = vmul.f32 %v300, %v300
        %v372 = vmul.f32 %v301, %v301
        %v373 = vmul.f32 %v302, %v302
        %v374 = vmul.f32 %v303, %v303
        %v375 = vmul.f32 %v304, %v304
        %v376 = vmul.f32 %v305, %v305
        %v377 = vmul.f32 %v306, %v306
        %v378 = vmul.f32 %v307, %v307
        %v379 = vmul.f32 %v308, %v308
        %v380 = vmul.f32 %v309, %v309
        %v381 = vmul.f32 %v310, %v310
        %v382 = vmul.f32 %v311, %v311
        %v383 = vmul.f32 %v312, %v312
        %v384 = vmul.f32 %v313, %v313
        %v385 = vmul.f32 %v314, %v314
        %v386 = vmul.f32 %v315, %v315
        %v387 = vmul.f32 %v316, %v316
        %v388 = vmul.f32 %v317, %v317
        %v389 = vmul.f32 %v318, %v318
        %v390 = vpack.c.bf16 %v327, %v326
        %v391 = vpack.c.bf16 %v359, %v358
        %v392 = vpack.c.bf16 %v329, %v328
        %v393 = vpack.c.bf16 %v361, %v360
        %v394 = vpack.c.bf16 %v331, %v330
        %v395 = vpack.c.bf16 %v363, %v362
        %v396 = vpack.c.bf16 %v333, %v332
        %v397 = vpack.c.bf16 %v365, %v364
        %v398 = vpack.c.bf16 %v335, %v334
        %v399 = vpack.c.bf16 %v367, %v366
        %v400 = vpack.c.bf16 %v337, %v336
        %v401 = vpack.c.bf16 %v369, %v368
        %v402 = vpack.c.bf16 %v339, %v338
        %v403 = vpack.c.bf16 %v371, %v370
        %v404 = vpack.c.bf16 %v341, %v340
        %v405 = vpack.c.bf16 %v373, %v372
        %v406 = vpack.c.bf16 %v343, %v342
        %v407 = vpack.c.bf16 %v375, %v374
        %v408 = vpack.c.bf16 %v345, %v344
        %v409 = vpack.c.bf16 %v377, %v376
        %v410 = vpack.c.bf16 %v347, %v346
        %v411 = vpack.c.bf16 %v379, %v378
        %v412 = vpack.c.bf16 %v349, %v348
        %v413 = vpack.c.bf16 %v381, %v380
        %v414 = vpack.c.bf16 %v351, %v350
        %v415 = vpack.c.bf16 %v383, %v382
        %v416 = vpack.c.bf16 %v353, %v352
        %v417 = vpack.c.bf16 %v385, %v384
        %v418 = vpack.c.bf16 %v355, %v354
        %v419 = vpack.c.bf16 %v387, %v386
        %v420 = vpack.c.bf16 %v357, %v356
        %v421 = vpack.c.bf16 %v389, %v388
        %v422 = vld [vmem:[#allocation7] sm:$0xff]
        %v423 = vld [vmem:[#allocation7 + $0x8] sm:$0xff]
        %v424 = vld [vmem:[#allocation7 + $0x10] sm:$0xff]
        %v425 = vld [vmem:[#allocation7 + $0x18] sm:$0xff]
        %v426 = vld [vmem:[#allocation7 + $0x20] sm:$0xff]
        %v427 = vld [vmem:[#allocation7 + $0x28] sm:$0xff]
        %v428 = vld [vmem:[#allocation7 + $0x30] sm:$0xff]
        %v429 = vld [vmem:[#allocation7 + $0x38] sm:$0xff]
        %v430 = vld [vmem:[#allocation7 + $0x40] sm:$0xff]
        %v431 = vld [vmem:[#allocation7 + $0x48] sm:$0xff]
        %v432 = vld [vmem:[#allocation7 + $0x50] sm:$0xff]
        %v433 = vld [vmem:[#allocation7 + $0x58] sm:$0xff]
        %v434 = vld [vmem:[#allocation7 + $0x60] sm:$0xff]
        %v435 = vld [vmem:[#allocation7 + $0x68] sm:$0xff]
        %v436 = vld [vmem:[#allocation7 + $0x70] sm:$0xff]
        %v437 = vld [vmem:[#allocation7 + $0x78] sm:$0xff]
        %v438 = vld [vmem:[#allocation7 + $0x80] sm:$0xff]
        %v439 = vld [vmem:[#allocation7 + $0x88] sm:$0xff]
        %v440 = vld [vmem:[#allocation7 + $0x90] sm:$0xff]
        %v441 = vld [vmem:[#allocation7 + $0x98] sm:$0xff]
        %v442 = vld [vmem:[#allocation7 + $0xa0] sm:$0xff]
        %v443 = vld [vmem:[#allocation7 + $0xa8] sm:$0xff]
        %v444 = vld [vmem:[#allocation7 + $0xb0] sm:$0xff]
        %v445 = vld [vmem:[#allocation7 + $0xb8] sm:$0xff]
        %v446 = vld [vmem:[#allocation7 + $0xc0] sm:$0xff]
        %v447 = vld [vmem:[#allocation7 + $0xc8] sm:$0xff]
        %v448 = vld [vmem:[#allocation7 + $0xd0] sm:$0xff]
        %v449 = vld [vmem:[#allocation7 + $0xd8] sm:$0xff]
        %v450 = vld [vmem:[#allocation7 + $0xe0] sm:$0xff]
        %v451 = vld [vmem:[#allocation7 + $0xe8] sm:$0xff]
        %v452 = vld [vmem:[#allocation7 + $0xf0] sm:$0xff]
        %v453 = vld [vmem:[#allocation7 + $0xf8] sm:$0xff]
        %v454 = vld [vmem:[#allocation7 + $0x100] sm:$0xff]
        %v455 = vld [vmem:[#allocation7 + $0x108] sm:$0xff]
        %v456 = vld [vmem:[#allocation7 + $0x110] sm:$0xff]
        %v457 = vld [vmem:[#allocation7 + $0x118] sm:$0xff]
        %v458 = vld [vmem:[#allocation7 + $0x120] sm:$0xff]
        %v459 = vld [vmem:[#allocation7 + $0x128] sm:$0xff]
        %v460 = vld [vmem:[#allocation7 + $0x130] sm:$0xff]
        %v461 = vld [vmem:[#allocation7 + $0x138] sm:$0xff]
        %v462 = vld [vmem:[#allocation7 + $0x140] sm:$0xff]
        %v463 = vld [vmem:[#allocation7 + $0x148] sm:$0xff]
        %v464 = vld [vmem:[#allocation7 + $0x150] sm:$0xff]
        %v465 = vld [vmem:[#allocation7 + $0x158] sm:$0xff]
        %v466 = vld [vmem:[#allocation7 + $0x160] sm:$0xff]
        %v467 = vld [vmem:[#allocation7 + $0x168] sm:$0xff]
        %v468 = vld [vmem:[#allocation7 + $0x170] sm:$0xff]
        %v469 = vld [vmem:[#allocation7 + $0x178] sm:$0xff]
        %v470 = vld [vmem:[#allocation7 + $0x180] sm:$0xff]
        %v471 = vld [vmem:[#allocation7 + $0x188] sm:$0xff]
        %v472 = vld [vmem:[#allocation7 + $0x190] sm:$0xff]
        %v473 = vld [vmem:[#allocation7 + $0x198] sm:$0xff]
        %v474 = vld [vmem:[#allocation7 + $0x1a0] sm:$0xff]
        %v475 = vld [vmem:[#allocation7 + $0x1a8] sm:$0xff]
        %v476 = vld [vmem:[#allocation7 + $0x1b0] sm:$0xff]
        %v477 = vld [vmem:[#allocation7 + $0x1b8] sm:$0xff]
        %v478 = vld [vmem:[#allocation7 + $0x1c0] sm:$0xff]
        %v479 = vld [vmem:[#allocation7 + $0x1c8] sm:$0xff]
        %v480 = vld [vmem:[#allocation7 + $0x1d0] sm:$0xff]
        %v481 = vld [vmem:[#allocation7 + $0x1d8] sm:$0xff]
        %v482 = vld [vmem:[#allocation7 + $0x1e0] sm:$0xff]
        %v483 = vld [vmem:[#allocation7 + $0x1e8] sm:$0xff]
        %v484 = vld [vmem:[#allocation7 + $0x1f0] sm:$0xff]
        %v485 = vld [vmem:[#allocation7 + $0x1f8] sm:$0xff]
        %v550 = vunpack.c.l.b16 %v422
        %v551 = vunpack.c.h.b16 %v422
        %v552 = vunpack.c.l.b16 %v423
        %v553 = vunpack.c.h.b16 %v423
        %v554 = vunpack.c.l.b16 %v424
        %v555 = vunpack.c.h.b16 %v424
        %v556 = vunpack.c.l.b16 %v425
        %v557 = vunpack.c.h.b16 %v425
        %v558 = vunpack.c.l.b16 %v426
        %v559 = vunpack.c.h.b16 %v426
        %v560 = vunpack.c.l.b16 %v427
        %v561 = vunpack.c.h.b16 %v427
        %v562 = vunpack.c.l.b16 %v428
        %v563 = vunpack.c.h.b16 %v428
        %v564 = vunpack.c.l.b16 %v429
        %v565 = vunpack.c.h.b16 %v429
        %v566 = vunpack.c.l.b16 %v430
        %v567 = vunpack.c.h.b16 %v430
        %v568 = vunpack.c.l.b16 %v431
        %v569 = vunpack.c.h.b16 %v431
        %v570 = vunpack.c.l.b16 %v432
        %v571 = vunpack.c.h.b16 %v432
        %v572 = vunpack.c.l.b16 %v433
        %v573 = vunpack.c.h.b16 %v433
        %v574 = vunpack.c.l.b16 %v434
        %v575 = vunpack.c.h.b16 %v434
        %v576 = vunpack.c.l.b16 %v435
        %v577 = vunpack.c.h.b16 %v435
        %v578 = vunpack.c.l.b16 %v436
        %v579 = vunpack.c.h.b16 %v436
        %v580 = vunpack.c.l.b16 %v437
        %v581 = vunpack.c.h.b16 %v437
        %v582 = vunpack.c.l.b16 %v438
        %v583 = vunpack.c.h.b16 %v438
        %v584 = vunpack.c.l.b16 %v439
        %v585 = vunpack.c.h.b16 %v439
        %v586 = vunpack.c.l.b16 %v440
        %v587 = vunpack.c.h.b16 %v440
        %v588 = vunpack.c.l.b16 %v441
        %v589 = vunpack.c.h.b16 %v441
        %v590 = vunpack.c.l.b16 %v442
        %v591 = vunpack.c.h.b16 %v442
        %v592 = vunpack.c.l.b16 %v443
        %v593 = vunpack.c.h.b16 %v443
        %v594 = vunpack.c.l.b16 %v444
        %v595 = vunpack.c.h.b16 %v444
        %v596 = vunpack.c.l.b16 %v445
        %v597 = vunpack.c.h.b16 %v445
        %v598 = vunpack.c.l.b16 %v446
        %v599 = vunpack.c.h.b16 %v446
        %v600 = vunpack.c.l.b16 %v447
        %v601 = vunpack.c.h.b16 %v447
        %v602 = vunpack.c.l.b16 %v448
        %v603 = vunpack.c.h.b16 %v448
        %v604 = vunpack.c.l.b16 %v449
        %v605 = vunpack.c.h.b16 %v449
        %v606 = vunpack.c.l.b16 %v450
        %v607 = vunpack.c.h.b16 %v450
        %v608 = vunpack.c.l.b16 %v451
        %v609 = vunpack.c.h.b16 %v451
        %v610 = vunpack.c.l.b16 %v452
        %v611 = vunpack.c.h.b16 %v452
        %v612 = vunpack.c.l.b16 %v453
        %v613 = vunpack.c.h.b16 %v453
        %v614 = vunpack.c.l.b16 %v454
        %v615 = vunpack.c.h.b16 %v454
        %v616 = vunpack.c.l.b16 %v455
        %v617 = vunpack.c.h.b16 %v455
        %v618 = vunpack.c.l.b16 %v456
        %v619 = vunpack.c.h.b16 %v456
        %v620 = vunpack.c.l.b16 %v457
        %v621 = vunpack.c.h.b16 %v457
        %v622 = vunpack.c.l.b16 %v458
        %v623 = vunpack.c.h.b16 %v458
        %v624 = vunpack.c.l.b16 %v459
        %v625 = vunpack.c.h.b16 %v459
        %v626 = vunpack.c.l.b16 %v460
        %v627 = vunpack.c.h.b16 %v460
        %v628 = vunpack.c.l.b16 %v461
        %v629 = vunpack.c.h.b16 %v461
        %v630 = vunpack.c.l.b16 %v462
        %v631 = vunpack.c.h.b16 %v462
        %v632 = vunpack.c.l.b16 %v463
        %v633 = vunpack.c.h.b16 %v463
        %v634 = vunpack.c.l.b16 %v464
        %v635 = vunpack.c.h.b16 %v464
        %v636 = vunpack.c.l.b16 %v465
        %v637 = vunpack.c.h.b16 %v465
        %v638 = vunpack.c.l.b16 %v466
        %v639 = vunpack.c.h.b16 %v466
        %v640 = vunpack.c.l.b16 %v467
        %v641 = vunpack.c.h.b16 %v467
        %v642 = vunpack.c.l.b16 %v468
        %v643 = vunpack.c.h.b16 %v468
        %v644 = vunpack.c.l.b16 %v469
        %v645 = vunpack.c.h.b16 %v469
        %v646 = vunpack.c.l.b16 %v470
        %v647 = vunpack.c.h.b16 %v470
        %v648 = vunpack.c.l.b16 %v471
        %v649 = vunpack.c.h.b16 %v471
        %v650 = vunpack.c.l.b16 %v472
        %v651 = vunpack.c.h.b16 %v472
        %v652 = vunpack.c.l.b16 %v473
        %v653 = vunpack.c.h.b16 %v473
        %v654 = vunpack.c.l.b16 %v474
        %v655 = vunpack.c.h.b16 %v474
        %v656 = vunpack.c.l.b16 %v475
        %v657 = vunpack.c.h.b16 %v475
        %v658 = vunpack.c.l.b16 %v476
        %v659 = vunpack.c.h.b16 %v476
        %v660 = vunpack.c.l.b16 %v477
        %v661 = vunpack.c.h.b16 %v477
        %v662 = vunpack.c.l.b16 %v478
        %v663 = vunpack.c.h.b16 %v478
        %v664 = vunpack.c.l.b16 %v479
        %v665 = vunpack.c.h.b16 %v479
        %v666 = vunpack.c.l.b16 %v480
        %v667 = vunpack.c.h.b16 %v480
        %v668 = vunpack.c.l.b16 %v481
        %v669 = vunpack.c.h.b16 %v481
        %v670 = vunpack.c.l.b16 %v482
        %v671 = vunpack.c.h.b16 %v482
        %v672 = vunpack.c.l.b16 %v483
        %v673 = vunpack.c.h.b16 %v483
        %v674 = vunpack.c.l.b16 %v484
        %v675 = vunpack.c.h.b16 %v484
        %v676 = vunpack.c.l.b16 %v485
        %v677 = vunpack.c.h.b16 %v485
        %v678 = vpack.c.b16 %v554, %v550
        %v679 = vpack.c.b16 %v555, %v551
        %v680 = vpack.c.b16 %v556, %v552
        %v681 = vpack.c.b16 %v557, %v553
        %v682 = vpack.c.b16 %v562, %v558
        %v683 = vpack.c.b16 %v563, %v559
        %v684 = vpack.c.b16 %v564, %v560
        %v685 = vpack.c.b16 %v565, %v561
        %v686 = vpack.c.b16 %v570, %v566
        %v687 = vpack.c.b16 %v571, %v567
        %v688 = vpack.c.b16 %v572, %v568
        %v689 = vpack.c.b16 %v573, %v569
        %v690 = vpack.c.b16 %v578, %v574
        %v691 = vpack.c.b16 %v579, %v575
        %v692 = vpack.c.b16 %v580, %v576
        %v693 = vpack.c.b16 %v581, %v577
        %v694 = vpack.c.b16 %v586, %v582
        %v695 = vpack.c.b16 %v587, %v583
        %v696 = vpack.c.b16 %v588, %v584
        %v697 = vpack.c.b16 %v589, %v585
        %v698 = vpack.c.b16 %v594, %v590
        %v699 = vpack.c.b16 %v595, %v591
        %v700 = vpack.c.b16 %v596, %v592
        %v701 = vpack.c.b16 %v597, %v593
        %v702 = vpack.c.b16 %v602, %v598
        %v703 = vpack.c.b16 %v603, %v599
        %v704 = vpack.c.b16 %v604, %v600
        %v705 = vpack.c.b16 %v605, %v601
        %v706 = vpack.c.b16 %v610, %v606
        %v707 = vpack.c.b16 %v611, %v607
        %v708 = vpack.c.b16 %v612, %v608
        %v709 = vpack.c.b16 %v613, %v609
        %v710 = vpack.c.b16 %v618, %v614
        %v711 = vpack.c.b16 %v619, %v615
        %v712 = vpack.c.b16 %v620, %v616
        %v713 = vpack.c.b16 %v621, %v617
        %v714 = vpack.c.b16 %v626, %v622
        %v715 = vpack.c.b16 %v627, %v623
        %v716 = vpack.c.b16 %v628, %v624
        %v717 = vpack.c.b16 %v629, %v625
        %v718 = vpack.c.b16 %v634, %v630
        %v719 = vpack.c.b16 %v635, %v631
        %v720 = vpack.c.b16 %v636, %v632
        %v721 = vpack.c.b16 %v637, %v633
        %v722 = vpack.c.b16 %v642, %v638
        %v723 = vpack.c.b16 %v643, %v639
        %v724 = vpack.c.b16 %v644, %v640
        %v725 = vpack.c.b16 %v645, %v641
        %v726 = vpack.c.b16 %v650, %v646
        %v727 = vpack.c.b16 %v651, %v647
        %v728 = vpack.c.b16 %v652, %v648
        %v729 = vpack.c.b16 %v653, %v649
        %v730 = vpack.c.b16 %v658, %v654
        %v731 = vpack.c.b16 %v659, %v655
        %v732 = vpack.c.b16 %v660, %v656
        %v733 = vpack.c.b16 %v661, %v657
        %v734 = vpack.c.b16 %v666, %v662
        %v735 = vpack.c.b16 %v667, %v663
        %v736 = vpack.c.b16 %v668, %v664
        %v737 = vpack.c.b16 %v669, %v665
        %v738 = vpack.c.b16 %v674, %v670
        %v739 = vpack.c.b16 %v675, %v671
        %v740 = vpack.c.b16 %v676, %v672
        %v741 = vpack.c.b16 %v677, %v673
        %806 = vmatprep.subr.bf16.mxu0 %v679
        %807 = vmatpush1.bf16.msra.mxu0 %v678
        %808 = vmatprep.subr.bf16.mxu0 %v683
        %809 = vmatpush1.bf16.msra.mxu0 %v682
        %810 = vmatprep.subr.bf16.mxu0 %v687
        %811 = vmatpush1.bf16.msra.mxu0 %v686
        %812 = vmatprep.subr.bf16.mxu0 %v691
        %813 = vmatpush1.bf16.msra.mxu0 %v690
        %814 = vmatprep.subr.bf16.mxu0 %v695
        %815 = vmatpush1.bf16.msra.mxu0 %v694
        %816 = vmatprep.subr.bf16.mxu0 %v699
        %817 = vmatpush1.bf16.msra.mxu0 %v698
        %818 = vmatprep.subr.bf16.mxu0 %v703
        %819 = vmatpush1.bf16.msra.mxu0 %v702
        %820 = vmatprep.subr.bf16.mxu0 %v707
        %821 = vmatpush1.bf16.msra.mxu0 %v706
        %822 = vmatprep.subr.bf16.mxu0 %v711
        %823 = vmatpush1.bf16.msra.mxu0 %v710
        %824 = vmatprep.subr.bf16.mxu0 %v715
        %825 = vmatpush1.bf16.msra.mxu0 %v714
        %826 = vmatprep.subr.bf16.mxu0 %v719
        %827 = vmatpush1.bf16.msra.mxu0 %v718
        %828 = vmatprep.subr.bf16.mxu0 %v723
        %829 = vmatpush1.bf16.msra.mxu0 %v722
        %830 = vmatprep.subr.bf16.mxu0 %v727
        %831 = vmatpush1.bf16.msra.mxu0 %v726
        %832 = vmatprep.subr.bf16.mxu0 %v731
        %833 = vmatpush1.bf16.msra.mxu0 %v730
        %834 = vmatprep.subr.bf16.mxu0 %v735
        %835 = vmatpush1.bf16.msra.mxu0 %v734
        %836 = vmatprep.subr.bf16.mxu0 %v739
        %837 = vmatpush1.bf16.msra.mxu0 %v738
        %838 = vmatprep.mubr.bf16.mxu0 %v391
        %839 = vmatmul.mubr.bf16.gmra.mrb[0].mxu0 %v390
        %v840 = vpop.f32.mrb[0].mxu0
        %v841 = vadd.f32 0.0, %v840
        %v842 = vpop.f32.mrb[0].mxu0
        %v843 = vadd.f32 0.0, %v842
        %v844 = vpop.f32.mrb[0].mxu0
        %v845 = vadd.f32 0.0, %v844
        %v846 = vpop.f32.mrb[0].mxu0
        %v847 = vadd.f32 0.0, %v846
        %848 = vmatprep.mubr.bf16.mxu0 %v393
        %849 = vmatmul.mubr.bf16.gmra.mrb[0].mxu0 %v392
        %v850 = vpop.f32.mrb[0].mxu0
        %v851 = vadd.f32 0.0, %v850
        %v852 = vpop.f32.mrb[0].mxu0
        %v853 = vadd.f32 0.0, %v852
        %v854 = vpop.f32.mrb[0].mxu0
        %v855 = vadd.f32 0.0, %v854
        %v856 = vpop.f32.mrb[0].mxu0
        %v857 = vadd.f32 0.0, %v856
        %858 = vmatprep.mubr.bf16.mxu0 %v395
        %859 = vmatmul.mubr.bf16.gmra.mrb[0].mxu0 %v394
        %v860 = vpop.f32.mrb[0].mxu0
        %v861 = vadd.f32 0.0, %v860
        %v862 = vpop.f32.mrb[0].mxu0
        %v863 = vadd.f32 0.0, %v862
        %v864 = vpop.f32.mrb[0].mxu0
        %v865 = vadd.f32 0.0, %v864
        %v866 = vpop.f32.mrb[0].mxu0
        %v867 = vadd.f32 0.0, %v866
        %868 = vmatprep.mubr.bf16.mxu0 %v397
        %869 = vmatmul.mubr.bf16.gmra.mrb[0].mxu0 %v396
        %v870 = vpop.f32.mrb[0].mxu0
        %v871 = vadd.f32 0.0, %v870
        %v872 = vpop.f32.mrb[0].mxu0
        %v873 = vadd.f32 0.0, %v872
        %v874 = vpop.f32.mrb[0].mxu0
        %v875 = vadd.f32 0.0, %v874
        %v876 = vpop.f32.mrb[0].mxu0
        %v877 = vadd.f32 0.0, %v876
        %878 = vmatprep.mubr.bf16.mxu0 %v399
        %879 = vmatmul.mubr.bf16.gmra.mrb[0].mxu0 %v398
        %v880 = vpop.f32.mrb[0].mxu0
        %v881 = vadd.f32 0.0, %v880
        %v882 = vpop.f32.mrb[0].mxu0
        %v883 = vadd.f32 0.0, %v882
        %v884 = vpop.f32.mrb[0].mxu0
        %v885 = vadd.f32 0.0, %v884
        %v886 = vpop.f32.mrb[0].mxu0
        %v887 = vadd.f32 0.0, %v886
        %888 = vmatprep.mubr.bf16.mxu0 %v401
        %889 = vmatmul.mubr.bf16.gmra.mrb[0].mxu0 %v400
        %v890 = vpop.f32.mrb[0].mxu0
        %v891 = vadd.f32 0.0, %v890
        %v892 = vpop.f32.mrb[0].mxu0
        %v893 = vadd.f32 0.0, %v892
        %v894 = vpop.f32.mrb[0].mxu0
        %v895 = vadd.f32 0.0, %v894
        %v896 = vpop.f32.mrb[0].mxu0
        %v897 = vadd.f32 0.0, %v896
        %898 = vmatprep.mubr.bf16.mxu0 %v403
        %899 = vmatmul.mubr.bf16.gmra.mrb[0].mxu0 %v402
        %v900 = vpop.f32.mrb[0].mxu0
        %v901 = vadd.f32 0.0, %v900
        %v902 = vpop.f32.mrb[0].mxu0
        %v903 = vadd.f32 0.0, %v902
        %v904 = vpop.f32.mrb[0].mxu0
        %v905 = vadd.f32 0.0, %v904
        %v906 = vpop.f32.mrb[0].mxu0
        %v907 = vadd.f32 0.0, %v906
        %908 = vmatprep.mubr.bf16.mxu0 %v405
        %909 = vmatmul.mubr.bf16.gmra.mrb[0].mxu0 %v404
        %v910 = vpop.f32.mrb[0].mxu0
        %v911 = vadd.f32 0.0, %v910
        %v912 = vpop.f32.mrb[0].mxu0
        %v913 = vadd.f32 0.0, %v912
        %v914 = vpop.f32.mrb[0].mxu0
        %v915 = vadd.f32 0.0, %v914
        %v916 = vpop.f32.mrb[0].mxu0
        %v917 = vadd.f32 0.0, %v916
        %918 = vmatprep.mubr.bf16.mxu0 %v407
        %919 = vmatmul.mubr.bf16.gmra.mrb[0].mxu0 %v406
        %v920 = vpop.f32.mrb[0].mxu0
        %v921 = vadd.f32 0.0, %v920
        %v922 = vpop.f32.mrb[0].mxu0
        %v923 = vadd.f32 0.0, %v922
        %v924 = vpop.f32.mrb[0].mxu0
        %v925 = vadd.f32 0.0, %v924
        %v926 = vpop.f32.mrb[0].mxu0
        %v927 = vadd.f32 0.0, %v926
        %928 = vmatprep.mubr.bf16.mxu0 %v409
        %929 = vmatmul.mubr.bf16.gmra.mrb[0].mxu0 %v408
        %v930 = vpop.f32.mrb[0].mxu0
        %v931 = vadd.f32 0.0, %v930
        %v932 = vpop.f32.mrb[0].mxu0
        %v933 = vadd.f32 0.0, %v932
        %v934 = vpop.f32.mrb[0].mxu0
        %v935 = vadd.f32 0.0, %v934
        %v936 = vpop.f32.mrb[0].mxu0
        %v937 = vadd.f32 0.0, %v936
        %938 = vmatprep.mubr.bf16.mxu0 %v411
        %939 = vmatmul.mubr.bf16.gmra.mrb[0].mxu0 %v410
        %v940 = vpop.f32.mrb[0].mxu0
        %v941 = vadd.f32 0.0, %v940
        %v942 = vpop.f32.mrb[0].mxu0
        %v943 = vadd.f32 0.0, %v942
        %v944 = vpop.f32.mrb[0].mxu0
        %v945 = vadd.f32 0.0, %v944
        %v946 = vpop.f32.mrb[0].mxu0
        %v947 = vadd.f32 0.0, %v946
        %948 = vmatprep.mubr.bf16.mxu0 %v413
        %949 = vmatmul.mubr.bf16.gmra.mrb[0].mxu0 %v412
        %v950 = vpop.f32.mrb[0].mxu0
        %v951 = vadd.f32 0.0, %v950
        %v952 = vpop.f32.mrb[0].mxu0
        %v953 = vadd.f32 0.0, %v952
        %v954 = vpop.f32.mrb[0].mxu0
        %v955 = vadd.f32 0.0, %v954
        %v956 = vpop.f32.mrb[0].mxu0
        %v957 = vadd.f32 0.0, %v956
        %958 = vmatprep.mubr.bf16.mxu0 %v415
        %959 = vmatmul.mubr.bf16.gmra.mrb[0].mxu0 %v414
        %v960 = vpop.f32.mrb[0].mxu0
        %v961 = vadd.f32 0.0, %v960
        %v962 = vpop.f32.mrb[0].mxu0
        %v963 = vadd.f32 0.0, %v962
        %v964 = vpop.f32.mrb[0].mxu0
        %v965 = vadd.f32 0.0, %v964
        %v966 = vpop.f32.mrb[0].mxu0
        %v967 = vadd.f32 0.0, %v966
        %968 = vmatprep.mubr.bf16.mxu0 %v417
        %969 = vmatmul.mubr.bf16.gmra.mrb[0].mxu0 %v416
        %v970 = vpop.f32.mrb[0].mxu0
        %v971 = vadd.f32 0.0, %v970
        %v972 = vpop.f32.mrb[0].mxu0
        %v973 = vadd.f32 0.0, %v972
        %v974 = vpop.f32.mrb[0].mxu0
        %v975 = vadd.f32 0.0, %v974
        %v976 = vpop.f32.mrb[0].mxu0
        %v977 = vadd.f32 0.0, %v976
        %978 = vmatprep.mubr.bf16.mxu0 %v419
        %979 = vmatmul.mubr.bf16.gmra.mrb[0].mxu0 %v418
        %v980 = vpop.f32.mrb[0].mxu0
        %v981 = vadd.f32 0.0, %v980
        %v982 = vpop.f32.mrb[0].mxu0
        %v983 = vadd.f32 0.0, %v982
        %v984 = vpop.f32.mrb[0].mxu0
        %v985 = vadd.f32 0.0, %v984
        %v986 = vpop.f32.mrb[0].mxu0
        %v987 = vadd.f32 0.0, %v986
        %988 = vmatprep.mubr.bf16.mxu0 %v421
        %989 = vmatmul.mubr.bf16.gmra.mrb[0].mxu0 %v420
        %v990 = vpop.f32.mrb[0].mxu0
        %v991 = vadd.f32 0.0, %v990
        %v992 = vpop.f32.mrb[0].mxu0
        %v993 = vadd.f32 0.0, %v992
        %v994 = vpop.f32.mrb[0].mxu0
        %v995 = vadd.f32 0.0, %v994
        %v996 = vpop.f32.mrb[0].mxu0
        %v997 = vadd.f32 0.0, %v996
        %998 = vdwg.mxu0
        %999 = vmatprep.subr.bf16.mxu0 %v681
        %1000 = vmatpush1.bf16.msra.mxu0 %v680
        %1001 = vmatprep.subr.bf16.mxu0 %v685
        %1002 = vmatpush1.bf16.msra.mxu0 %v684
        %1003 = vmatprep.subr.bf16.mxu0 %v689
        %1004 = vmatpush1.bf16.msra.mxu0 %v688
        %1005 = vmatprep.subr.bf16.mxu0 %v693
        %1006 = vmatpush1.bf16.msra.mxu0 %v692
        %1007 = vmatprep.subr.bf16.mxu0 %v697
        %1008 = vmatpush1.bf16.msra.mxu0 %v696
        %1009 = vmatprep.subr.bf16.mxu0 %v701
        %1010 = vmatpush1.bf16.msra.mxu0 %v700
        %1011 = vmatprep.subr.bf16.mxu0 %v705
        %1012 = vmatpush1.bf16.msra.mxu0 %v704
        %1013 = vmatprep.subr.bf16.mxu0 %v709
        %1014 = vmatpush1.bf16.msra.mxu0 %v708
        %1015 = vmatprep.subr.bf16.mxu0 %v713
        %1016 = vmatpush1.bf16.msra.mxu0 %v712
        %1017 = vmatprep.subr.bf16.mxu0 %v717
        %1018 = vmatpush1.bf16.msra.mxu0 %v716
        %1019 = vmatprep.subr.bf16.mxu0 %v721
        %1020 = vmatpush1.bf16.msra.mxu0 %v720
        %1021 = vmatprep.subr.bf16.mxu0 %v725
        %1022 = vmatpush1.bf16.msra.mxu0 %v724
        %1023 = vmatprep.subr.bf16.mxu0 %v729
        %1024 = vmatpush1.bf16.msra.mxu0 %v728
        %1025 = vmatprep.subr.bf16.mxu0 %v733
        %1026 = vmatpush1.bf16.msra.mxu0 %v732
        %1027 = vmatprep.subr.bf16.mxu0 %v737
        %1028 = vmatpush1.bf16.msra.mxu0 %v736
        %1029 = vmatprep.subr.bf16.mxu0 %v741
        %1030 = vmatpush1.bf16.msra.mxu0 %v740
        %1031 = vmatprep.mubr.bf16.mxu0 %v391
        %1032 = vmatmul.mubr.bf16.gmra.mrb[0].mxu0 %v390
        %v1033 = vpop.f32.mrb[0].mxu0
        %v1034 = vadd.f32 0.0, %v1033
        %v1035 = vpop.f32.mrb[0].mxu0
        %v1036 = vadd.f32 0.0, %v1035
        %v1037 = vpop.f32.mrb[0].mxu0
        %v1038 = vadd.f32 0.0, %v1037
        %v1039 = vpop.f32.mrb[0].mxu0
        %v1040 = vadd.f32 0.0, %v1039
        %1041 = vmatprep.mubr.bf16.mxu0 %v393
        %1042 = vmatmul.mubr.bf16.gmra.mrb[0].mxu0 %v392
        %v1043 = vpop.f32.mrb[0].mxu0
        %v1044 = vadd.f32 0.0, %v1043
        %v1045 = vpop.f32.mrb[0].mxu0
        %v1046 = vadd.f32 0.0, %v1045
        %v1047 = vpop.f32.mrb[0].mxu0
        %v1048 = vadd.f32 0.0, %v1047
        %v1049 = vpop.f32.mrb[0].mxu0
        %v1050 = vadd.f32 0.0, %v1049
        %1051 = vmatprep.mubr.bf16.mxu0 %v395
        %1052 = vmatmul.mubr.bf16.gmra.mrb[0].mxu0 %v394
        %v1053 = vpop.f32.mrb[0].mxu0
        %v1054 = vadd.f32 0.0, %v1053
        %v1055 = vpop.f32.mrb[0].mxu0
        %v1056 = vadd.f32 0.0, %v1055
        %v1057 = vpop.f32.mrb[0].mxu0
        %v1058 = vadd.f32 0.0, %v1057
        %v1059 = vpop.f32.mrb[0].mxu0
        %v1060 = vadd.f32 0.0, %v1059
        %1061 = vmatprep.mubr.bf16.mxu0 %v397
        %1062 = vmatmul.mubr.bf16.gmra.mrb[0].mxu0 %v396
        %v1063 = vpop.f32.mrb[0].mxu0
        %v1064 = vadd.f32 0.0, %v1063
        %v1065 = vpop.f32.mrb[0].mxu0
        %v1066 = vadd.f32 0.0, %v1065
        %v1067 = vpop.f32.mrb[0].mxu0
        %v1068 = vadd.f32 0.0, %v1067
        %v1069 = vpop.f32.mrb[0].mxu0
        %v1070 = vadd.f32 0.0, %v1069
        %1071 = vmatprep.mubr.bf16.mxu0 %v399
        %1072 = vmatmul.mubr.bf16.gmra.mrb[0].mxu0 %v398
        %v1073 = vpop.f32.mrb[0].mxu0
        %v1074 = vadd.f32 0.0, %v1073
        %v1075 = vpop.f32.mrb[0].mxu0
        %v1076 = vadd.f32 0.0, %v1075
        %v1077 = vpop.f32.mrb[0].mxu0
        %v1078 = vadd.f32 0.0, %v1077
        %v1079 = vpop.f32.mrb[0].mxu0
        %v1080 = vadd.f32 0.0, %v1079
        %1081 = vmatprep.mubr.bf16.mxu0 %v401
        %1082 = vmatmul.mubr.bf16.gmra.mrb[0].mxu0 %v400
        %v1083 = vpop.f32.mrb[0].mxu0
        %v1084 = vadd.f32 0.0, %v1083
        %v1085 = vpop.f32.mrb[0].mxu0
        %v1086 = vadd.f32 0.0, %v1085
        %v1087 = vpop.f32.mrb[0].mxu0
        %v1088 = vadd.f32 0.0, %v1087
        %v1089 = vpop.f32.mrb[0].mxu0
        %v1090 = vadd.f32 0.0, %v1089
        %1091 = vmatprep.mubr.bf16.mxu0 %v403
        %1092 = vmatmul.mubr.bf16.gmra.mrb[0].mxu0 %v402
        %v1093 = vpop.f32.mrb[0].mxu0
        %v1094 = vadd.f32 0.0, %v1093
        %v1095 = vpop.f32.mrb[0].mxu0
        %v1096 = vadd.f32 0.0, %v1095
        %v1097 = vpop.f32.mrb[0].mxu0
        %v1098 = vadd.f32 0.0, %v1097
        %v1099 = vpop.f32.mrb[0].mxu0
        %v1100 = vadd.f32 0.0, %v1099
        %1101 = vmatprep.mubr.bf16.mxu0 %v405
        %1102 = vmatmul.mubr.bf16.gmra.mrb[0].mxu0 %v404
        %v1103 = vpop.f32.mrb[0].mxu0
        %v1104 = vadd.f32 0.0, %v1103
        %v1105 = vpop.f32.mrb[0].mxu0
        %v1106 = vadd.f32 0.0, %v1105
        %v1107 = vpop.f32.mrb[0].mxu0
        %v1108 = vadd.f32 0.0, %v1107
        %v1109 = vpop.f32.mrb[0].mxu0
        %v1110 = vadd.f32 0.0, %v1109
        %1111 = vmatprep.mubr.bf16.mxu0 %v407
        %1112 = vmatmul.mubr.bf16.gmra.mrb[0].mxu0 %v406
        %v1113 = vpop.f32.mrb[0].mxu0
        %v1114 = vadd.f32 0.0, %v1113
        %v1115 = vpop.f32.mrb[0].mxu0
        %v1116 = vadd.f32 0.0, %v1115
        %v1117 = vpop.f32.mrb[0].mxu0
        %v1118 = vadd.f32 0.0, %v1117
        %v1119 = vpop.f32.mrb[0].mxu0
        %v1120 = vadd.f32 0.0, %v1119
        %1121 = vmatprep.mubr.bf16.mxu0 %v409
        %1122 = vmatmul.mubr.bf16.gmra.mrb[0].mxu0 %v408
        %v1123 = vpop.f32.mrb[0].mxu0
        %v1124 = vadd.f32 0.0, %v1123
        %v1125 = vpop.f32.mrb[0].mxu0
        %v1126 = vadd.f32 0.0, %v1125
        %v1127 = vpop.f32.mrb[0].mxu0
        %v1128 = vadd.f32 0.0, %v1127
        %v1129 = vpop.f32.mrb[0].mxu0
        %v1130 = vadd.f32 0.0, %v1129
        %1131 = vmatprep.mubr.bf16.mxu0 %v411
        %1132 = vmatmul.mubr.bf16.gmra.mrb[0].mxu0 %v410
        %v1133 = vpop.f32.mrb[0].mxu0
        %v1134 = vadd.f32 0.0, %v1133
        %v1135 = vpop.f32.mrb[0].mxu0
        %v1136 = vadd.f32 0.0, %v1135
        %v1137 = vpop.f32.mrb[0].mxu0
        %v1138 = vadd.f32 0.0, %v1137
        %v1139 = vpop.f32.mrb[0].mxu0
        %v1140 = vadd.f32 0.0, %v1139
        %1141 = vmatprep.mubr.bf16.mxu0 %v413
        %1142 = vmatmul.mubr.bf16.gmra.mrb[0].mxu0 %v412
        %v1143 = vpop.f32.mrb[0].mxu0
        %v1144 = vadd.f32 0.0, %v1143
        %v1145 = vpop.f32.mrb[0].mxu0
        %v1146 = vadd.f32 0.0, %v1145
        %v1147 = vpop.f32.mrb[0].mxu0
        %v1148 = vadd.f32 0.0, %v1147
        %v1149 = vpop.f32.mrb[0].mxu0
        %v1150 = vadd.f32 0.0, %v1149
        %1151 = vmatprep.mubr.bf16.mxu0 %v415
        %1152 = vmatmul.mubr.bf16.gmra.mrb[0].mxu0 %v414
        %v1153 = vpop.f32.mrb[0].mxu0
        %v1154 = vadd.f32 0.0, %v1153
        %v1155 = vpop.f32.mrb[0].mxu0
        %v1156 = vadd.f32 0.0, %v1155
        %v1157 = vpop.f32.mrb[0].mxu0
        %v1158 = vadd.f32 0.0, %v1157
        %v1159 = vpop.f32.mrb[0].mxu0
        %v1160 = vadd.f32 0.0, %v1159
        %1161 = vmatprep.mubr.bf16.mxu0 %v417
        %1162 = vmatmul.mubr.bf16.gmra.mrb[0].mxu0 %v416
        %v1163 = vpop.f32.mrb[0].mxu0
        %v1164 = vadd.f32 0.0, %v1163
        %v1165 = vpop.f32.mrb[0].mxu0
        %v1166 = vadd.f32 0.0, %v1165
        %v1167 = vpop.f32.mrb[0].mxu0
        %v1168 = vadd.f32 0.0, %v1167
        %v1169 = vpop.f32.mrb[0].mxu0
        %v1170 = vadd.f32 0.0, %v1169
        %1171 = vmatprep.mubr.bf16.mxu0 %v419
        %1172 = vmatmul.mubr.bf16.gmra.mrb[0].mxu0 %v418
        %v1173 = vpop.f32.mrb[0].mxu0
        %v1174 = vadd.f32 0.0, %v1173
        %v1175 = vpop.f32.mrb[0].mxu0
        %v1176 = vadd.f32 0.0, %v1175
        %v1177 = vpop.f32.mrb[0].mxu0
        %v1178 = vadd.f32 0.0, %v1177
        %v1179 = vpop.f32.mrb[0].mxu0
        %v1180 = vadd.f32 0.0, %v1179
        %1181 = vmatprep.mubr.bf16.mxu0 %v421
        %1182 = vmatmul.mubr.bf16.gmra.mrb[0].mxu0 %v420
        %v1183 = vpop.f32.mrb[0].mxu0
        %v1184 = vadd.f32 0.0, %v1183
        %v1185 = vpop.f32.mrb[0].mxu0
        %v1186 = vadd.f32 0.0, %v1185
        %v1187 = vpop.f32.mrb[0].mxu0
        %v1188 = vadd.f32 0.0, %v1187
        %v1189 = vpop.f32.mrb[0].mxu0
        %v1190 = vadd.f32 0.0, %v1189
        %1191 = vdwg.mxu0
        %v1192 = vrsqrt.pop %v1034
        %v1193 = vmul.f32 %v1034, %v1192
        %vm1194 = vcmp.eq.f32.partialorder %v1034, inf
        %v1195 = vsel %vm1194, %v1034, %v1193
        %vm1196 = vcmp.eq.f32.partialorder %v1034, 0.0
        %v1197 = vand.u32 %v1034, 2147483648
        %v1198 = vsel %vm1196, %v1197, %v1195
        %v1199 = vrsqrt.pop %v1036
        %v1200 = vmul.f32 %v1036, %v1199
        %vm1201 = vcmp.eq.f32.partialorder %v1036, inf
        %v1202 = vsel %vm1201, %v1036, %v1200
        %vm1203 = vcmp.eq.f32.partialorder %v1036, 0.0
        %v1204 = vand.u32 %v1036, 2147483648
        %v1205 = vsel %vm1203, %v1204, %v1202
        %v1206 = vrsqrt.pop %v1038
        %v1207 = vmul.f32 %v1038, %v1206
        %vm1208 = vcmp.eq.f32.partialorder %v1038, inf
        %v1209 = vsel %vm1208, %v1038, %v1207
        %vm1210 = vcmp.eq.f32.partialorder %v1038, 0.0
        %v1211 = vand.u32 %v1038, 2147483648
        %v1212 = vsel %vm1210, %v1211, %v1209
        %v1213 = vrsqrt.pop %v1040
        %v1214 = vmul.f32 %v1040, %v1213
        %vm1215 = vcmp.eq.f32.partialorder %v1040, inf
        %v1216 = vsel %vm1215, %v1040, %v1214
        %vm1217 = vcmp.eq.f32.partialorder %v1040, 0.0
        %v1218 = vand.u32 %v1040, 2147483648
        %v1219 = vsel %vm1217, %v1218, %v1216
        %v1220 = vrsqrt.pop %v1044
        %v1221 = vmul.f32 %v1044, %v1220
        %vm1222 = vcmp.eq.f32.partialorder %v1044, inf
        %v1223 = vsel %vm1222, %v1044, %v1221
        %vm1224 = vcmp.eq.f32.partialorder %v1044, 0.0
        %v1225 = vand.u32 %v1044, 2147483648
        %v1226 = vsel %vm1224, %v1225, %v1223
        %v1227 = vrsqrt.pop %v1046
        %v1228 = vmul.f32 %v1046, %v1227
        %vm1229 = vcmp.eq.f32.partialorder %v1046, inf
        %v1230 = vsel %vm1229, %v1046, %v1228
        %vm1231 = vcmp.eq.f32.partialorder %v1046, 0.0
        %v1232 = vand.u32 %v1046, 2147483648
        %v1233 = vsel %vm1231, %v1232, %v1230
        %v1234 = vrsqrt.pop %v1048
        %v1235 = vmul.f32 %v1048, %v1234
        %vm1236 = vcmp.eq.f32.partialorder %v1048, inf
        %v1237 = vsel %vm1236, %v1048, %v1235
        %vm1238 = vcmp.eq.f32.partialorder %v1048, 0.0
        %v1239 = vand.u32 %v1048, 2147483648
        %v1240 = vsel %vm1238, %v1239, %v1237
        %v1241 = vrsqrt.pop %v1050
        %v1242 = vmul.f32 %v1050, %v1241
        %vm1243 = vcmp.eq.f32.partialorder %v1050, inf
        %v1244 = vsel %vm1243, %v1050, %v1242
        %vm1245 = vcmp.eq.f32.partialorder %v1050, 0.0
        %v1246 = vand.u32 %v1050, 2147483648
        %v1247 = vsel %vm1245, %v1246, %v1244
        %v1248 = vrsqrt.pop %v1054
        %v1249 = vmul.f32 %v1054, %v1248
        %vm1250 = vcmp.eq.f32.partialorder %v1054, inf
        %v1251 = vsel %vm1250, %v1054, %v1249
        %vm1252 = vcmp.eq.f32.partialorder %v1054, 0.0
        %v1253 = vand.u32 %v1054, 2147483648
        %v1254 = vsel %vm1252, %v1253, %v1251
        %v1255 = vrsqrt.pop %v1056
        %v1256 = vmul.f32 %v1056, %v1255
        %vm1257 = vcmp.eq.f32.partialorder %v1056, inf
        %v1258 = vsel %vm1257, %v1056, %v1256
        %vm1259 = vcmp.eq.f32.partialorder %v1056, 0.0
        %v1260 = vand.u32 %v1056, 2147483648
        %v1261 = vsel %vm1259, %v1260, %v1258
        %v1262 = vrsqrt.pop %v1058
        %v1263 = vmul.f32 %v1058, %v1262
        %vm1264 = vcmp.eq.f32.partialorder %v1058, inf
        %v1265 = vsel %vm1264, %v1058, %v1263
        %vm1266 = vcmp.eq.f32.partialorder %v1058, 0.0
        %v1267 = vand.u32 %v1058, 2147483648
        %v1268 = vsel %vm1266, %v1267, %v1265
        %v1269 = vrsqrt.pop %v1060
        %v1270 = vmul.f32 %v1060, %v1269
        %vm1271 = vcmp.eq.f32.partialorder %v1060, inf
        %v1272 = vsel %vm1271, %v1060, %v1270
        %vm1273 = vcmp.eq.f32.partialorder %v1060, 0.0
        %v1274 = vand.u32 %v1060, 2147483648
        %v1275 = vsel %vm1273, %v1274, %v1272
        %v1276 = vrsqrt.pop %v1064
        %v1277 = vmul.f32 %v1064, %v1276
        %vm1278 = vcmp.eq.f32.partialorder %v1064, inf
        %v1279 = vsel %vm1278, %v1064, %v1277
        %vm1280 = vcmp.eq.f32.partialorder %v1064, 0.0
        %v1281 = vand.u32 %v1064, 2147483648
        %v1282 = vsel %vm1280, %v1281, %v1279
        %v1283 = vrsqrt.pop %v1066
        %v1284 = vmul.f32 %v1066, %v1283
        %vm1285 = vcmp.eq.f32.partialorder %v1066, inf
        %v1286 = vsel %vm1285, %v1066, %v1284
        %vm1287 = vcmp.eq.f32.partialorder %v1066, 0.0
        %v1288 = vand.u32 %v1066, 2147483648
        %v1289 = vsel %vm1287, %v1288, %v1286
        %v1290 = vrsqrt.pop %v1068
        %v1291 = vmul.f32 %v1068, %v1290
        %vm1292 = vcmp.eq.f32.partialorder %v1068, inf
        %v1293 = vsel %vm1292, %v1068, %v1291
        %vm1294 = vcmp.eq.f32.partialorder %v1068, 0.0
        %v1295 = vand.u32 %v1068, 2147483648
        %v1296 = vsel %vm1294, %v1295, %v1293
        %v1297 = vrsqrt.pop %v1070
        %v1298 = vmul.f32 %v1070, %v1297
        %vm1299 = vcmp.eq.f32.partialorder %v1070, inf
        %v1300 = vsel %vm1299, %v1070, %v1298
        %vm1301 = vcmp.eq.f32.partialorder %v1070, 0.0
        %v1302 = vand.u32 %v1070, 2147483648
        %v1303 = vsel %vm1301, %v1302, %v1300
        %v1304 = vrsqrt.pop %v1074
        %v1305 = vmul.f32 %v1074, %v1304
        %vm1306 = vcmp.eq.f32.partialorder %v1074, inf
        %v1307 = vsel %vm1306, %v1074, %v1305
        %vm1308 = vcmp.eq.f32.partialorder %v1074, 0.0
        %v1309 = vand.u32 %v1074, 2147483648
        %v1310 = vsel %vm1308, %v1309, %v1307
        %v1311 = vrsqrt.pop %v1076
        %v1312 = vmul.f32 %v1076, %v1311
        %vm1313 = vcmp.eq.f32.partialorder %v1076, inf
        %v1314 = vsel %vm1313, %v1076, %v1312
        %vm1315 = vcmp.eq.f32.partialorder %v1076, 0.0
        %v1316 = vand.u32 %v1076, 2147483648
        %v1317 = vsel %vm1315, %v1316, %v1314
        %v1318 = vrsqrt.pop %v1078
        %v1319 = vmul.f32 %v1078, %v1318
        %vm1320 = vcmp.eq.f32.partialorder %v1078, inf
        %v1321 = vsel %vm1320, %v1078, %v1319
        %vm1322 = vcmp.eq.f32.partialorder %v1078, 0.0
        %v1323 = vand.u32 %v1078, 2147483648
        %v1324 = vsel %vm1322, %v1323, %v1321
        %v1325 = vrsqrt.pop %v1080
        %v1326 = vmul.f32 %v1080, %v1325
        %vm1327 = vcmp.eq.f32.partialorder %v1080, inf
        %v1328 = vsel %vm1327, %v1080, %v1326
        %vm1329 = vcmp.eq.f32.partialorder %v1080, 0.0
        %v1330 = vand.u32 %v1080, 2147483648
        %v1331 = vsel %vm1329, %v1330, %v1328
        %v1332 = vrsqrt.pop %v1084
        %v1333 = vmul.f32 %v1084, %v1332
        %vm1334 = vcmp.eq.f32.partialorder %v1084, inf
        %v1335 = vsel %vm1334, %v1084, %v1333
        %vm1336 = vcmp.eq.f32.partialorder %v1084, 0.0
        %v1337 = vand.u32 %v1084, 2147483648
        %v1338 = vsel %vm1336, %v1337, %v1335
        %v1339 = vrsqrt.pop %v1086
        %v1340 = vmul.f32 %v1086, %v1339
        %vm1341 = vcmp.eq.f32.partialorder %v1086, inf
        %v1342 = vsel %vm1341, %v1086, %v1340
        %vm1343 = vcmp.eq.f32.partialorder %v1086, 0.0
        %v1344 = vand.u32 %v1086, 2147483648
        %v1345 = vsel %vm1343, %v1344, %v1342
        %v1346 = vrsqrt.pop %v1088
        %v1347 = vmul.f32 %v1088, %v1346
        %vm1348 = vcmp.eq.f32.partialorder %v1088, inf
        %v1349 = vsel %vm1348, %v1088, %v1347
        %vm1350 = vcmp.eq.f32.partialorder %v1088, 0.0
        %v1351 = vand.u32 %v1088, 2147483648
        %v1352 = vsel %vm1350, %v1351, %v1349
        %v1353 = vrsqrt.pop %v1090
        %v1354 = vmul.f32 %v1090, %v1353
        %vm1355 = vcmp.eq.f32.partialorder %v1090, inf
        %v1356 = vsel %vm1355, %v1090, %v1354
        %vm1357 = vcmp.eq.f32.partialorder %v1090, 0.0
        %v1358 = vand.u32 %v1090, 2147483648
        %v1359 = vsel %vm1357, %v1358, %v1356
        %v1360 = vrsqrt.pop %v1094
        %v1361 = vmul.f32 %v1094, %v1360
        %vm1362 = vcmp.eq.f32.partialorder %v1094, inf
        %v1363 = vsel %vm1362, %v1094, %v1361
        %vm1364 = vcmp.eq.f32.partialorder %v1094, 0.0
        %v1365 = vand.u32 %v1094, 2147483648
        %v1366 = vsel %vm1364, %v1365, %v1363
        %v1367 = vrsqrt.pop %v1096
        %v1368 = vmul.f32 %v1096, %v1367
        %vm1369 = vcmp.eq.f32.partialorder %v1096, inf
        %v1370 = vsel %vm1369, %v1096, %v1368
        %vm1371 = vcmp.eq.f32.partialorder %v1096, 0.0
        %v1372 = vand.u32 %v1096, 2147483648
        %v1373 = vsel %vm1371, %v1372, %v1370
        %v1374 = vrsqrt.pop %v1098
        %v1375 = vmul.f32 %v1098, %v1374
        %vm1376 = vcmp.eq.f32.partialorder %v1098, inf
        %v1377 = vsel %vm1376, %v1098, %v1375
        %vm1378 = vcmp.eq.f32.partialorder %v1098, 0.0
        %v1379 = vand.u32 %v1098, 2147483648
        %v1380 = vsel %vm1378, %v1379, %v1377
        %v1381 = vrsqrt.pop %v1100
        %v1382 = vmul.f32 %v1100, %v1381
        %vm1383 = vcmp.eq.f32.partialorder %v1100, inf
        %v1384 = vsel %vm1383, %v1100, %v1382
        %vm1385 = vcmp.eq.f32.partialorder %v1100, 0.0
        %v1386 = vand.u32 %v1100, 2147483648
        %v1387 = vsel %vm1385, %v1386, %v1384
        %v1388 = vrsqrt.pop %v1104
        %v1389 = vmul.f32 %v1104, %v1388
        %vm1390 = vcmp.eq.f32.partialorder %v1104, inf
        %v1391 = vsel %vm1390, %v1104, %v1389
        %vm1392 = vcmp.eq.f32.partialorder %v1104, 0.0
        %v1393 = vand.u32 %v1104, 2147483648
        %v1394 = vsel %vm1392, %v1393, %v1391
        %v1395 = vrsqrt.pop %v1106
        %v1396 = vmul.f32 %v1106, %v1395
        %vm1397 = vcmp.eq.f32.partialorder %v1106, inf
        %v1398 = vsel %vm1397, %v1106, %v1396
        %vm1399 = vcmp.eq.f32.partialorder %v1106, 0.0
        %v1400 = vand.u32 %v1106, 2147483648
        %v1401 = vsel %vm1399, %v1400, %v1398
        %v1402 = vrsqrt.pop %v1108
        %v1403 = vmul.f32 %v1108, %v1402
        %vm1404 = vcmp.eq.f32.partialorder %v1108, inf
        %v1405 = vsel %vm1404, %v1108, %v1403
        %vm1406 = vcmp.eq.f32.partialorder %v1108, 0.0
        %v1407 = vand.u32 %v1108, 2147483648
        %v1408 = vsel %vm1406, %v1407, %v1405
        %v1409 = vrsqrt.pop %v1110
        %v1410 = vmul.f32 %v1110, %v1409
        %vm1411 = vcmp.eq.f32.partialorder %v1110, inf
        %v1412 = vsel %vm1411, %v1110, %v1410
        %vm1413 = vcmp.eq.f32.partialorder %v1110, 0.0
        %v1414 = vand.u32 %v1110, 2147483648
        %v1415 = vsel %vm1413, %v1414, %v1412
        %v1416 = vrsqrt.pop %v1114
        %v1417 = vmul.f32 %v1114, %v1416
        %vm1418 = vcmp.eq.f32.partialorder %v1114, inf
        %v1419 = vsel %vm1418, %v1114, %v1417
        %vm1420 = vcmp.eq.f32.partialorder %v1114, 0.0
        %v1421 = vand.u32 %v1114, 2147483648
        %v1422 = vsel %vm1420, %v1421, %v1419
        %v1423 = vrsqrt.pop %v1116
        %v1424 = vmul.f32 %v1116, %v1423
        %vm1425 = vcmp.eq.f32.partialorder %v1116, inf
        %v1426 = vsel %vm1425, %v1116, %v1424
        %vm1427 = vcmp.eq.f32.partialorder %v1116, 0.0
        %v1428 = vand.u32 %v1116, 2147483648
        %v1429 = vsel %vm1427, %v1428, %v1426
        %v1430 = vrsqrt.pop %v1118
        %v1431 = vmul.f32 %v1118, %v1430
        %vm1432 = vcmp.eq.f32.partialorder %v1118, inf
        %v1433 = vsel %vm1432, %v1118, %v1431
        %vm1434 = vcmp.eq.f32.partialorder %v1118, 0.0
        %v1435 = vand.u32 %v1118, 2147483648
        %v1436 = vsel %vm1434, %v1435, %v1433
        %v1437 = vrsqrt.pop %v1120
        %v1438 = vmul.f32 %v1120, %v1437
        %vm1439 = vcmp.eq.f32.partialorder %v1120, inf
        %v1440 = vsel %vm1439, %v1120, %v1438
        %vm1441 = vcmp.eq.f32.partialorder %v1120, 0.0
        %v1442 = vand.u32 %v1120, 2147483648
        %v1443 = vsel %vm1441, %v1442, %v1440
        %v1444 = vrsqrt.pop %v1124
        %v1445 = vmul.f32 %v1124, %v1444
        %vm1446 = vcmp.eq.f32.partialorder %v1124, inf
        %v1447 = vsel %vm1446, %v1124, %v1445
        %vm1448 = vcmp.eq.f32.partialorder %v1124, 0.0
        %v1449 = vand.u32 %v1124, 2147483648
        %v1450 = vsel %vm1448, %v1449, %v1447
        %v1451 = vrsqrt.pop %v1126
        %v1452 = vmul.f32 %v1126, %v1451
        %vm1453 = vcmp.eq.f32.partialorder %v1126, inf
        %v1454 = vsel %vm1453, %v1126, %v1452
        %vm1455 = vcmp.eq.f32.partialorder %v1126, 0.0
        %v1456 = vand.u32 %v1126, 2147483648
        %v1457 = vsel %vm1455, %v1456, %v1454
        %v1458 = vrsqrt.pop %v1128
        %v1459 = vmul.f32 %v1128, %v1458
        %vm1460 = vcmp.eq.f32.partialorder %v1128, inf
        %v1461 = vsel %vm1460, %v1128, %v1459
        %vm1462 = vcmp.eq.f32.partialorder %v1128, 0.0
        %v1463 = vand.u32 %v1128, 2147483648
        %v1464 = vsel %vm1462, %v1463, %v1461
        %v1465 = vrsqrt.pop %v1130
        %v1466 = vmul.f32 %v1130, %v1465
        %vm1467 = vcmp.eq.f32.partialorder %v1130, inf
        %v1468 = vsel %vm1467, %v1130, %v1466
        %vm1469 = vcmp.eq.f32.partialorder %v1130, 0.0
        %v1470 = vand.u32 %v1130, 2147483648
        %v1471 = vsel %vm1469, %v1470, %v1468
        %v1472 = vrsqrt.pop %v1134
        %v1473 = vmul.f32 %v1134, %v1472
        %vm1474 = vcmp.eq.f32.partialorder %v1134, inf
        %v1475 = vsel %vm1474, %v1134, %v1473
        %vm1476 = vcmp.eq.f32.partialorder %v1134, 0.0
        %v1477 = vand.u32 %v1134, 2147483648
        %v1478 = vsel %vm1476, %v1477, %v1475
        %v1479 = vrsqrt.pop %v1136
        %v1480 = vmul.f32 %v1136, %v1479
        %vm1481 = vcmp.eq.f32.partialorder %v1136, inf
        %v1482 = vsel %vm1481, %v1136, %v1480
        %vm1483 = vcmp.eq.f32.partialorder %v1136, 0.0
        %v1484 = vand.u32 %v1136, 2147483648
        %v1485 = vsel %vm1483, %v1484, %v1482
        %v1486 = vrsqrt.pop %v1138
        %v1487 = vmul.f32 %v1138, %v1486
        %vm1488 = vcmp.eq.f32.partialorder %v1138, inf
        %v1489 = vsel %vm1488, %v1138, %v1487
        %vm1490 = vcmp.eq.f32.partialorder %v1138, 0.0
        %v1491 = vand.u32 %v1138, 2147483648
        %v1492 = vsel %vm1490, %v1491, %v1489
        %v1493 = vrsqrt.pop %v1140
        %v1494 = vmul.f32 %v1140, %v1493
        %vm1495 = vcmp.eq.f32.partialorder %v1140, inf
        %v1496 = vsel %vm1495, %v1140, %v1494
        %vm1497 = vcmp.eq.f32.partialorder %v1140, 0.0
        %v1498 = vand.u32 %v1140, 2147483648
        %v1499 = vsel %vm1497, %v1498, %v1496
        %v1500 = vrsqrt.pop %v1144
        %v1501 = vmul.f32 %v1144, %v1500
        %vm1502 = vcmp.eq.f32.partialorder %v1144, inf
        %v1503 = vsel %vm1502, %v1144, %v1501
        %vm1504 = vcmp.eq.f32.partialorder %v1144, 0.0
        %v1505 = vand.u32 %v1144, 2147483648
        %v1506 = vsel %vm1504, %v1505, %v1503
        %v1507 = vrsqrt.pop %v1146
        %v1508 = vmul.f32 %v1146, %v1507
        %vm1509 = vcmp.eq.f32.partialorder %v1146, inf
        %v1510 = vsel %vm1509, %v1146, %v1508
        %vm1511 = vcmp.eq.f32.partialorder %v1146, 0.0
        %v1512 = vand.u32 %v1146, 2147483648
        %v1513 = vsel %vm1511, %v1512, %v1510
        %v1514 = vrsqrt.pop %v1148
        %v1515 = vmul.f32 %v1148, %v1514
        %vm1516 = vcmp.eq.f32.partialorder %v1148, inf
        %v1517 = vsel %vm1516, %v1148, %v1515
        %vm1518 = vcmp.eq.f32.partialorder %v1148, 0.0
        %v1519 = vand.u32 %v1148, 2147483648
        %v1520 = vsel %vm1518, %v1519, %v1517
        %v1521 = vrsqrt.pop %v1150
        %v1522 = vmul.f32 %v1150, %v1521
        %vm1523 = vcmp.eq.f32.partialorder %v1150, inf
        %v1524 = vsel %vm1523, %v1150, %v1522
        %vm1525 = vcmp.eq.f32.partialorder %v1150, 0.0
        %v1526 = vand.u32 %v1150, 2147483648
        %v1527 = vsel %vm1525, %v1526, %v1524
        %v1528 = vrsqrt.pop %v1154
        %v1529 = vmul.f32 %v1154, %v1528
        %vm1530 = vcmp.eq.f32.partialorder %v1154, inf
        %v1531 = vsel %vm1530, %v1154, %v1529
        %vm1532 = vcmp.eq.f32.partialorder %v1154, 0.0
        %v1533 = vand.u32 %v1154, 2147483648
        %v1534 = vsel %vm1532, %v1533, %v1531
        %v1535 = vrsqrt.pop %v1156
        %v1536 = vmul.f32 %v1156, %v1535
        %vm1537 = vcmp.eq.f32.partialorder %v1156, inf
        %v1538 = vsel %vm1537, %v1156, %v1536
        %vm1539 = vcmp.eq.f32.partialorder %v1156, 0.0
        %v1540 = vand.u32 %v1156, 2147483648
        %v1541 = vsel %vm1539, %v1540, %v1538
        %v1542 = vrsqrt.pop %v1158
        %v1543 = vmul.f32 %v1158, %v1542
        %vm1544 = vcmp.eq.f32.partialorder %v1158, inf
        %v1545 = vsel %vm1544, %v1158, %v1543
        %vm1546 = vcmp.eq.f32.partialorder %v1158, 0.0
        %v1547 = vand.u32 %v1158, 2147483648
        %v1548 = vsel %vm1546, %v1547, %v1545
        %v1549 = vrsqrt.pop %v1160
        %v1550 = vmul.f32 %v1160, %v1549
        %vm1551 = vcmp.eq.f32.partialorder %v1160, inf
        %v1552 = vsel %vm1551, %v1160, %v1550
        %vm1553 = vcmp.eq.f32.partialorder %v1160, 0.0
        %v1554 = vand.u32 %v1160, 2147483648
        %v1555 = vsel %vm1553, %v1554, %v1552
        %v1556 = vrsqrt.pop %v1164
        %v1557 = vmul.f32 %v1164, %v1556
        %vm1558 = vcmp.eq.f32.partialorder %v1164, inf
        %v1559 = vsel %vm1558, %v1164, %v1557
        %vm1560 = vcmp.eq.f32.partialorder %v1164, 0.0
        %v1561 = vand.u32 %v1164, 2147483648
        %v1562 = vsel %vm1560, %v1561, %v1559
        %v1563 = vrsqrt.pop %v1166
        %v1564 = vmul.f32 %v1166, %v1563
        %vm1565 = vcmp.eq.f32.partialorder %v1166, inf
        %v1566 = vsel %vm1565, %v1166, %v1564
        %vm1567 = vcmp.eq.f32.partialorder %v1166, 0.0
        %v1568 = vand.u32 %v1166, 2147483648
        %v1569 = vsel %vm1567, %v1568, %v1566
        %v1570 = vrsqrt.pop %v1168
        %v1571 = vmul.f32 %v1168, %v1570
        %vm1572 = vcmp.eq.f32.partialorder %v1168, inf
        %v1573 = vsel %vm1572, %v1168, %v1571
        %vm1574 = vcmp.eq.f32.partialorder %v1168, 0.0
        %v1575 = vand.u32 %v1168, 2147483648
        %v1576 = vsel %vm1574, %v1575, %v1573
        %v1577 = vrsqrt.pop %v1170
        %v1578 = vmul.f32 %v1170, %v1577
        %vm1579 = vcmp.eq.f32.partialorder %v1170, inf
        %v1580 = vsel %vm1579, %v1170, %v1578
        %vm1581 = vcmp.eq.f32.partialorder %v1170, 0.0
        %v1582 = vand.u32 %v1170, 2147483648
        %v1583 = vsel %vm1581, %v1582, %v1580
        %v1584 = vrsqrt.pop %v1174
        %v1585 = vmul.f32 %v1174, %v1584
        %vm1586 = vcmp.eq.f32.partialorder %v1174, inf
        %v1587 = vsel %vm1586, %v1174, %v1585
        %vm1588 = vcmp.eq.f32.partialorder %v1174, 0.0
        %v1589 = vand.u32 %v1174, 2147483648
        %v1590 = vsel %vm1588, %v1589, %v1587
        %v1591 = vrsqrt.pop %v1176
        %v1592 = vmul.f32 %v1176, %v1591
        %vm1593 = vcmp.eq.f32.partialorder %v1176, inf
        %v1594 = vsel %vm1593, %v1176, %v1592
        %vm1595 = vcmp.eq.f32.partialorder %v1176, 0.0
        %v1596 = vand.u32 %v1176, 2147483648
        %v1597 = vsel %vm1595, %v1596, %v1594
        %v1598 = vrsqrt.pop %v1178
        %v1599 = vmul.f32 %v1178, %v1598
        %vm1600 = vcmp.eq.f32.partialorder %v1178, inf
        %v1601 = vsel %vm1600, %v1178, %v1599
        %vm1602 = vcmp.eq.f32.partialorder %v1178, 0.0
        %v1603 = vand.u32 %v1178, 2147483648
        %v1604 = vsel %vm1602, %v1603, %v1601
        %v1605 = vrsqrt.pop %v1180
        %v1606 = vmul.f32 %v1180, %v1605
        %vm1607 = vcmp.eq.f32.partialorder %v1180, inf
        %v1608 = vsel %vm1607, %v1180, %v1606
        %vm1609 = vcmp.eq.f32.partialorder %v1180, 0.0
        %v1610 = vand.u32 %v1180, 2147483648
        %v1611 = vsel %vm1609, %v1610, %v1608
        %v1612 = vrsqrt.pop %v1184
        %v1613 = vmul.f32 %v1184, %v1612
        %vm1614 = vcmp.eq.f32.partialorder %v1184, inf
        %v1615 = vsel %vm1614, %v1184, %v1613
        %vm1616 = vcmp.eq.f32.partialorder %v1184, 0.0
        %v1617 = vand.u32 %v1184, 2147483648
        %v1618 = vsel %vm1616, %v1617, %v1615
        %v1619 = vrsqrt.pop %v1186
        %v1620 = vmul.f32 %v1186, %v1619
        %vm1621 = vcmp.eq.f32.partialorder %v1186, inf
        %v1622 = vsel %vm1621, %v1186, %v1620
        %vm1623 = vcmp.eq.f32.partialorder %v1186, 0.0
        %v1624 = vand.u32 %v1186, 2147483648
        %v1625 = vsel %vm1623, %v1624, %v1622
        %v1626 = vrsqrt.pop %v1188
        %v1627 = vmul.f32 %v1188, %v1626
        %vm1628 = vcmp.eq.f32.partialorder %v1188, inf
        %v1629 = vsel %vm1628, %v1188, %v1627
        %vm1630 = vcmp.eq.f32.partialorder %v1188, 0.0
        %v1631 = vand.u32 %v1188, 2147483648
        %v1632 = vsel %vm1630, %v1631, %v1629
        %v1633 = vrsqrt.pop %v1190
        %v1634 = vmul.f32 %v1190, %v1633
        %vm1635 = vcmp.eq.f32.partialorder %v1190, inf
        %v1636 = vsel %vm1635, %v1190, %v1634
        %vm1637 = vcmp.eq.f32.partialorder %v1190, 0.0
        %v1638 = vand.u32 %v1190, 2147483648
        %v1639 = vsel %vm1637, %v1638, %v1636
        %v1640 = vld [vmem:[%s254] sm:$0xff]
        %v1641 = vld [vmem:[%s254 + $0x8] sm:$0xff]
        %v1642 = vld [vmem:[%s254 + $0x10] sm:$0xff]
        %v1643 = vld [vmem:[%s254 + $0x18] sm:$0xff]
        %v1644 = vld [vmem:[%s254 + $0x20] sm:$0xff]
        %v1645 = vld [vmem:[%s254 + $0x28] sm:$0xff]
        %v1646 = vld [vmem:[%s254 + $0x30] sm:$0xff]
        %v1647 = vld [vmem:[%s254 + $0x38] sm:$0xff]
        %v1648 = vld [vmem:[%s254 + $0x40] sm:$0xff]
        %v1649 = vld [vmem:[%s254 + $0x48] sm:$0xff]
        %v1650 = vld [vmem:[%s254 + $0x50] sm:$0xff]
        %v1651 = vld [vmem:[%s254 + $0x58] sm:$0xff]
        %v1652 = vld [vmem:[%s254 + $0x60] sm:$0xff]
        %v1653 = vld [vmem:[%s254 + $0x68] sm:$0xff]
        %v1654 = vld [vmem:[%s254 + $0x70] sm:$0xff]
        %v1655 = vld [vmem:[%s254 + $0x78] sm:$0xff]
        %v1656 = vld [vmem:[%s254 + $0x80] sm:$0xff]
        %v1657 = vld [vmem:[%s254 + $0x88] sm:$0xff]
        %v1658 = vld [vmem:[%s254 + $0x90] sm:$0xff]
        %v1659 = vld [vmem:[%s254 + $0x98] sm:$0xff]
        %v1660 = vld [vmem:[%s254 + $0xa0] sm:$0xff]
        %v1661 = vld [vmem:[%s254 + $0xa8] sm:$0xff]
        %v1662 = vld [vmem:[%s254 + $0xb0] sm:$0xff]
        %v1663 = vld [vmem:[%s254 + $0xb8] sm:$0xff]
        %v1664 = vld [vmem:[%s254 + $0xc0] sm:$0xff]
        %v1665 = vld [vmem:[%s254 + $0xc8] sm:$0xff]
        %v1666 = vld [vmem:[%s254 + $0xd0] sm:$0xff]
        %v1667 = vld [vmem:[%s254 + $0xd8] sm:$0xff]
        %v1668 = vld [vmem:[%s254 + $0xe0] sm:$0xff]
        %v1669 = vld [vmem:[%s254 + $0xe8] sm:$0xff]
        %v1670 = vld [vmem:[%s254 + $0xf0] sm:$0xff]
        %v1671 = vld [vmem:[%s254 + $0xf8] sm:$0xff]
        %v1672 = vld [vmem:[%s254 + $0x100] sm:$0xff]
        %v1673 = vld [vmem:[%s254 + $0x108] sm:$0xff]
        %v1674 = vld [vmem:[%s254 + $0x110] sm:$0xff]
        %v1675 = vld [vmem:[%s254 + $0x118] sm:$0xff]
        %v1676 = vld [vmem:[%s254 + $0x120] sm:$0xff]
        %v1677 = vld [vmem:[%s254 + $0x128] sm:$0xff]
        %v1678 = vld [vmem:[%s254 + $0x130] sm:$0xff]
        %v1679 = vld [vmem:[%s254 + $0x138] sm:$0xff]
        %v1680 = vld [vmem:[%s254 + $0x140] sm:$0xff]
        %v1681 = vld [vmem:[%s254 + $0x148] sm:$0xff]
        %v1682 = vld [vmem:[%s254 + $0x150] sm:$0xff]
        %v1683 = vld [vmem:[%s254 + $0x158] sm:$0xff]
        %v1684 = vld [vmem:[%s254 + $0x160] sm:$0xff]
        %v1685 = vld [vmem:[%s254 + $0x168] sm:$0xff]
        %v1686 = vld [vmem:[%s254 + $0x170] sm:$0xff]
        %v1687 = vld [vmem:[%s254 + $0x178] sm:$0xff]
        %v1688 = vld [vmem:[%s254 + $0x180] sm:$0xff]
        %v1689 = vld [vmem:[%s254 + $0x188] sm:$0xff]
        %v1690 = vld [vmem:[%s254 + $0x190] sm:$0xff]
        %v1691 = vld [vmem:[%s254 + $0x198] sm:$0xff]
        %v1692 = vld [vmem:[%s254 + $0x1a0] sm:$0xff]
        %v1693 = vld [vmem:[%s254 + $0x1a8] sm:$0xff]
        %v1694 = vld [vmem:[%s254 + $0x1b0] sm:$0xff]
        %v1695 = vld [vmem:[%s254 + $0x1b8] sm:$0xff]
        %v1696 = vld [vmem:[%s254 + $0x1c0] sm:$0xff]
        %v1697 = vld [vmem:[%s254 + $0x1c8] sm:$0xff]
        %v1698 = vld [vmem:[%s254 + $0x1d0] sm:$0xff]
        %v1699 = vld [vmem:[%s254 + $0x1d8] sm:$0xff]
        %v1700 = vld [vmem:[%s254 + $0x1e0] sm:$0xff]
        %v1701 = vld [vmem:[%s254 + $0x1e8] sm:$0xff]
        %v1702 = vld [vmem:[%s254 + $0x1f0] sm:$0xff]
        %v1703 = vld [vmem:[%s254 + $0x1f8] sm:$0xff]
        %v1704 = vmul.f32 %v1198, %v1640
        %v1705 = vmul.f32 %v1205, %v1641
        %v1706 = vmul.f32 %v1212, %v1642
        %v1707 = vmul.f32 %v1219, %v1643
        %v1708 = vmul.f32 %v1226, %v1644
        %v1709 = vmul.f32 %v1233, %v1645
        %v1710 = vmul.f32 %v1240, %v1646
        %v1711 = vmul.f32 %v1247, %v1647
        %v1712 = vmul.f32 %v1254, %v1648
        %v1713 = vmul.f32 %v1261, %v1649
        %v1714 = vmul.f32 %v1268, %v1650
        %v1715 = vmul.f32 %v1275, %v1651
        %v1716 = vmul.f32 %v1282, %v1652
        %v1717 = vmul.f32 %v1289, %v1653
        %v1718 = vmul.f32 %v1296, %v1654
        %v1719 = vmul.f32 %v1303, %v1655
        %v1720 = vmul.f32 %v1310, %v1656
        %v1721 = vmul.f32 %v1317, %v1657
        %v1722 = vmul.f32 %v1324, %v1658
        %v1723 = vmul.f32 %v1331, %v1659
        %v1724 = vmul.f32 %v1338, %v1660
        %v1725 = vmul.f32 %v1345, %v1661
        %v1726 = vmul.f32 %v1352, %v1662
        %v1727 = vmul.f32 %v1359, %v1663
        %v1728 = vmul.f32 %v1366, %v1664
        %v1729 = vmul.f32 %v1373, %v1665
        %v1730 = vmul.f32 %v1380, %v1666
        %v1731 = vmul.f32 %v1387, %v1667
        %v1732 = vmul.f32 %v1394, %v1668
        %v1733 = vmul.f32 %v1401, %v1669
        %v1734 = vmul.f32 %v1408, %v1670
        %v1735 = vmul.f32 %v1415, %v1671
        %v1736 = vmul.f32 %v1422, %v1672
        %v1737 = vmul.f32 %v1429, %v1673
        %v1738 = vmul.f32 %v1436, %v1674
        %v1739 = vmul.f32 %v1443, %v1675
        %v1740 = vmul.f32 %v1450, %v1676
        %v1741 = vmul.f32 %v1457, %v1677
        %v1742 = vmul.f32 %v1464, %v1678
        %v1743 = vmul.f32 %v1471, %v1679
        %v1744 = vmul.f32 %v1478, %v1680
        %v1745 = vmul.f32 %v1485, %v1681
        %v1746 = vmul.f32 %v1492, %v1682
        %v1747 = vmul.f32 %v1499, %v1683
        %v1748 = vmul.f32 %v1506, %v1684
        %v1749 = vmul.f32 %v1513, %v1685
        %v1750 = vmul.f32 %v1520, %v1686
        %v1751 = vmul.f32 %v1527, %v1687
        %v1752 = vmul.f32 %v1534, %v1688
        %v1753 = vmul.f32 %v1541, %v1689
        %v1754 = vmul.f32 %v1548, %v1690
        %v1755 = vmul.f32 %v1555, %v1691
        %v1756 = vmul.f32 %v1562, %v1692
        %v1757 = vmul.f32 %v1569, %v1693
        %v1758 = vmul.f32 %v1576, %v1694
        %v1759 = vmul.f32 %v1583, %v1695
        %v1760 = vmul.f32 %v1590, %v1696
        %v1761 = vmul.f32 %v1597, %v1697
        %v1762 = vmul.f32 %v1604, %v1698
        %v1763 = vmul.f32 %v1611, %v1699
        %v1764 = vmul.f32 %v1618, %v1700
        %v1765 = vmul.f32 %v1625, %v1701
        %v1766 = vmul.f32 %v1632, %v1702
        %v1767 = vmul.f32 %v1639, %v1703
        %v1768 = vadd.f32 %v841, %v1704
        %v1769 = vadd.f32 %v843, %v1705
        %v1770 = vadd.f32 %v845, %v1706
        %v1771 = vadd.f32 %v847, %v1707
        %v1772 = vadd.f32 %v851, %v1708
        %v1773 = vadd.f32 %v853, %v1709
        %v1774 = vadd.f32 %v855, %v1710
        %v1775 = vadd.f32 %v857, %v1711
        %v1776 = vadd.f32 %v861, %v1712
        %v1777 = vadd.f32 %v863, %v1713
        %v1778 = vadd.f32 %v865, %v1714
        %v1779 = vadd.f32 %v867, %v1715
        %v1780 = vadd.f32 %v871, %v1716
        %v1781 = vadd.f32 %v873, %v1717
        %v1782 = vadd.f32 %v875, %v1718
        %v1783 = vadd.f32 %v877, %v1719
        %v1784 = vadd.f32 %v881, %v1720
        %v1785 = vadd.f32 %v883, %v1721
        %v1786 = vadd.f32 %v885, %v1722
        %v1787 = vadd.f32 %v887, %v1723
        %v1788 = vadd.f32 %v891, %v1724
        %v1789 = vadd.f32 %v893, %v1725
        %v1790 = vadd.f32 %v895, %v1726
        %v1791 = vadd.f32 %v897, %v1727
        %v1792 = vadd.f32 %v901, %v1728
        %v1793 = vadd.f32 %v903, %v1729
        %v1794 = vadd.f32 %v905, %v1730
        %v1795 = vadd.f32 %v907, %v1731
        %v1796 = vadd.f32 %v911, %v1732
        %v1797 = vadd.f32 %v913, %v1733
        %v1798 = vadd.f32 %v915, %v1734
        %v1799 = vadd.f32 %v917, %v1735
        %v1800 = vadd.f32 %v921, %v1736
        %v1801 = vadd.f32 %v923, %v1737
        %v1802 = vadd.f32 %v925, %v1738
        %v1803 = vadd.f32 %v927, %v1739
        %v1804 = vadd.f32 %v931, %v1740
        %v1805 = vadd.f32 %v933, %v1741
        %v1806 = vadd.f32 %v935, %v1742
        %v1807 = vadd.f32 %v937, %v1743
        %v1808 = vadd.f32 %v941, %v1744
        %v1809 = vadd.f32 %v943, %v1745
        %v1810 = vadd.f32 %v945, %v1746
        %v1811 = vadd.f32 %v947, %v1747
        %v1812 = vadd.f32 %v951, %v1748
        %v1813 = vadd.f32 %v953, %v1749
        %v1814 = vadd.f32 %v955, %v1750
        %v1815 = vadd.f32 %v957, %v1751
        %v1816 = vadd.f32 %v961, %v1752
        %v1817 = vadd.f32 %v963, %v1753
        %v1818 = vadd.f32 %v965, %v1754
        %v1819 = vadd.f32 %v967, %v1755
        %v1820 = vadd.f32 %v971, %v1756
        %v1821 = vadd.f32 %v973, %v1757
        %v1822 = vadd.f32 %v975, %v1758
        %v1823 = vadd.f32 %v977, %v1759
        %v1824 = vadd.f32 %v981, %v1760
        %v1825 = vadd.f32 %v983, %v1761
        %v1826 = vadd.f32 %v985, %v1762
        %v1827 = vadd.f32 %v987, %v1763
        %v1828 = vadd.f32 %v991, %v1764
        %v1829 = vadd.f32 %v993, %v1765
        %v1830 = vadd.f32 %v995, %v1766
        %v1831 = vadd.f32 %v997, %v1767
        %1832 = vst [vmem:[%s283] sm:$0xff] %v1768
        %1833 = vst [vmem:[%s283 + $0x8] sm:$0xff] %v1769
        %1834 = vst [vmem:[%s283 + $0x10] sm:$0xff] %v1770
        %1835 = vst [vmem:[%s283 + $0x18] sm:$0xff] %v1771
        %1836 = vst [vmem:[%s283 + $0x20] sm:$0xff] %v1772
        %1837 = vst [vmem:[%s283 + $0x28] sm:$0xff] %v1773
        %1838 = vst [vmem:[%s283 + $0x30] sm:$0xff] %v1774
        %1839 = vst [vmem:[%s283 + $0x38] sm:$0xff] %v1775
        %1840 = vst [vmem:[%s283 + $0x40] sm:$0xff] %v1776
        %1841 = vst [vmem:[%s283 + $0x48] sm:$0xff] %v1777
        %1842 = vst [vmem:[%s283 + $0x50] sm:$0xff] %v1778
        %1843 = vst [vmem:[%s283 + $0x58] sm:$0xff] %v1779
        %1844 = vst [vmem:[%s283 + $0x60] sm:$0xff] %v1780
        %1845 = vst [vmem:[%s283 + $0x68] sm:$0xff] %v1781
        %1846 = vst [vmem:[%s283 + $0x70] sm:$0xff] %v1782
        %1847 = vst [vmem:[%s283 + $0x78] sm:$0xff] %v1783
        %1848 = vst [vmem:[%s283 + $0x80] sm:$0xff] %v1784
        %1849 = vst [vmem:[%s283 + $0x88] sm:$0xff] %v1785
        %1850 = vst [vmem:[%s283 + $0x90] sm:$0xff] %v1786
        %1851 = vst [vmem:[%s283 + $0x98] sm:$0xff] %v1787
        %1852 = vst [vmem:[%s283 + $0xa0] sm:$0xff] %v1788
        %1853 = vst [vmem:[%s283 + $0xa8] sm:$0xff] %v1789
        %1854 = vst [vmem:[%s283 + $0xb0] sm:$0xff] %v1790
        %1855 = vst [vmem:[%s283 + $0xb8] sm:$0xff] %v1791
        %1856 = vst [vmem:[%s283 + $0xc0] sm:$0xff] %v1792
        %1857 = vst [vmem:[%s283 + $0xc8] sm:$0xff] %v1793
        %1858 = vst [vmem:[%s283 + $0xd0] sm:$0xff] %v1794
        %1859 = vst [vmem:[%s283 + $0xd8] sm:$0xff] %v1795
        %1860 = vst [vmem:[%s283 + $0xe0] sm:$0xff] %v1796
        %1861 = vst [vmem:[%s283 + $0xe8] sm:$0xff] %v1797
        %1862 = vst [vmem:[%s283 + $0xf0] sm:$0xff] %v1798
        %1863 = vst [vmem:[%s283 + $0xf8] sm:$0xff] %v1799
        %1864 = vst [vmem:[%s283 + $0x100] sm:$0xff] %v1800
        %1865 = vst [vmem:[%s283 + $0x108] sm:$0xff] %v1801
        %1866 = vst [vmem:[%s283 + $0x110] sm:$0xff] %v1802
        %1867 = vst [vmem:[%s283 + $0x118] sm:$0xff] %v1803
        %1868 = vst [vmem:[%s283 + $0x120] sm:$0xff] %v1804
        %1869 = vst [vmem:[%s283 + $0x128] sm:$0xff] %v1805
        %1870 = vst [vmem:[%s283 + $0x130] sm:$0xff] %v1806
        %1871 = vst [vmem:[%s283 + $0x138] sm:$0xff] %v1807
        %1872 = vst [vmem:[%s283 + $0x140] sm:$0xff] %v1808
        %1873 = vst [vmem:[%s283 + $0x148] sm:$0xff] %v1809
        %1874 = vst [vmem:[%s283 + $0x150] sm:$0xff] %v1810
        %1875 = vst [vmem:[%s283 + $0x158] sm:$0xff] %v1811
        %1876 = vst [vmem:[%s283 + $0x160] sm:$0xff] %v1812
        %1877 = vst [vmem:[%s283 + $0x168] sm:$0xff] %v1813
        %1878 = vst [vmem:[%s283 + $0x170] sm:$0xff] %v1814
        %1879 = vst [vmem:[%s283 + $0x178] sm:$0xff] %v1815
        %1880 = vst [vmem:[%s283 + $0x180] sm:$0xff] %v1816
        %1881 = vst [vmem:[%s283 + $0x188] sm:$0xff] %v1817
        %1882 = vst [vmem:[%s283 + $0x190] sm:$0xff] %v1818
        %1883 = vst [vmem:[%s283 + $0x198] sm:$0xff] %v1819
        %1884 = vst [vmem:[%s283 + $0x1a0] sm:$0xff] %v1820
        %1885 = vst [vmem:[%s283 + $0x1a8] sm:$0xff] %v1821
        %1886 = vst [vmem:[%s283 + $0x1b0] sm:$0xff] %v1822
        %1887 = vst [vmem:[%s283 + $0x1b8] sm:$0xff] %v1823
        %1888 = vst [vmem:[%s283 + $0x1c0] sm:$0xff] %v1824
        %1889 = vst [vmem:[%s283 + $0x1c8] sm:$0xff] %v1825
        %1890 = vst [vmem:[%s283 + $0x1d0] sm:$0xff] %v1826
        %1891 = vst [vmem:[%s283 + $0x1d8] sm:$0xff] %v1827
        %1892 = vst [vmem:[%s283 + $0x1e0] sm:$0xff] %v1828
        %1893 = vst [vmem:[%s283 + $0x1e8] sm:$0xff] %v1829
        %1894 = vst [vmem:[%s283 + $0x1f0] sm:$0xff] %v1830
        %1895 = vst [vmem:[%s283 + $0x1f8] sm:$0xff] %v1831
        %s1896 = sand.u32 %s127, 1
        %s1897 = scalar_lea.sflag [#allocation4], %s1896
        %s1898 = sand.u32 %s127, 1
        %s1899 = smul.addr %s1898, 512
        %s1900 = scalar_lea.vmem [#allocation10], %s1899
        // Predicated region
        $region53: #{tpu_custom_call.1} parent=35 // pred_check
          %p1901 = pneg %p137
        $region54: #{tpu_custom_call.1} parent=35 // pred_check_branch
          %1903 = sbr.rel (%p1901) target = $region56
        $region55: #{tpu_custom_call.1} parent=35 // pred_region
          %s1904 = smul.u32 32, %s25
          %s1906 = ssub.s32 8192, 8192
          %1907 = vsyncadd %s1897, %s1906
          %s1908 = smul.addr %s1904, 2
          %s1909 = smul.addr %s1908, 128
          %s1910 = scalar_lea.hbm %s4, %s1909
          %s1911 = sshll.u32 %s1900, 4
          %s1912 = int_to_ptr.vmem [resolvable:$true] %s1911
          %1917 = dma.vmem_to_hbm [thread:$0]  %s1912, 8192, %s1910, %s1897, 256, 256, 16
        $region56: #{tpu_custom_call.1} parent=35 // pred_fallthru
          _
      $region36: #{tpu_custom_call.1} parent=5 // pred_fallthru
        _
      %p1918 = scmp.le.s32.totalorder 2, %s20
      // Predicated region
      $region57: #{tpu_custom_call.1} parent=5 // pred_check
        %p1919 = pneg %p1918
      $region58: #{tpu_custom_call.1} parent=5 // pred_check_branch
        %1921 = sbr.rel (%p1919) target = $region60
      $region59: #{tpu_custom_call.1} parent=5 // pred_region
        %s1922 = ssub.s32 %s20, 2
        // Predicated region
        $region61: #{tpu_custom_call.1} parent=59 // pred_check
          %p1923 = pneg %p143
        $region62: #{tpu_custom_call.1} parent=59 // pred_check_branch
          %1925 = sbr.rel (%p1923) target = $region64
        $region63: #{tpu_custom_call.1} parent=59 // pred_region
          %s1926 = sand.u32 %s128, 1
          %s1927 = scalar_lea.sflag [#allocation4], %s1926
          %s1928 = sand.u32 %s128, 1
          %s1929 = smul.addr %s1928, 512
          %s1930 = scalar_lea.vmem [#allocation10], %s1929
          %1931 = dma.done %s1927, 8192
        $region64: #{tpu_custom_call.1} parent=59 // pred_fallthru
          _
      $region60: #{tpu_custom_call.1} parent=5 // pred_fallthru
        _
    $region6: #{tpu_custom_call.1} parent=1 // loop_footer
      %s24 = sadd.s32 1, %s20
    $region7: #{tpu_custom_call.1} parent=1 // loop_footer_branch
      %19 = sbr.rel target = $region3
    $region8: #{tpu_custom_call.1} parent=1 // loop_exit
      _
    %1932 = vsyncpa [#allocation3], 1
    %s1933 = scalar_lea.sflag [#allocation3], 1
    %1934 = vsyncpa %s1933, 1
    %1935 = vsyncpa [#allocation6], 1
    %s1936 = scalar_lea.sflag [#allocation6], 1
    %1937 = vsyncpa %s1936, 1
    %1938 = vsyncpa [#allocation9], 1
    %s1939 = scalar_lea.sflag [#allocation9], 1
    %1940 = vsyncpa %s1939, 1
    %1941 = vsyncpa [#allocation4], 1
    %s1942 = scalar_lea.sflag [#allocation4], 1
    %1943 = vsyncpa %s1942, 1

</llo_original>
